<compile_context>
chip_gen: v7x
topology: tpu7x:2x2x1
jax: 0.10.0
libtpu: 0.0.40
codegen_flags: <defaults>
</compile_context>

<pallas_src>
import functools

import jax
import jax.numpy as jnp
from jax import lax
from jax.experimental import pallas as pl
from jax.experimental.pallas import tpu as pltpu

KERNEL_SIZES = (1, 3, 5)          # matches the PyTorch default kernel_sizes


def _round_up(x, m):
    return (x + m - 1) // m * m


def _vmem_capacity_bytes():
    """Per-core VMEM capacity; conservative (v7x) fallback if query fails."""
    try:
        return int(pltpu.get_tpu_info().vmem_capacity_bytes)
    except Exception:
        return 64 * 1024 * 1024


def _vmem_bytes(shape, dtype):
    """VMEM bytes for a tile, accounting for lane/sublane padding."""
    itemsize = jnp.dtype(dtype).itemsize
    sub_tile = 8 * max(1, 4 // itemsize)       # 8 rows f32, 16 rows bf16
    dims = list(shape)
    if len(dims) >= 1:
        dims[-1] = _round_up(dims[-1], 128)
    if len(dims) >= 2:
        dims[-2] = _round_up(dims[-2], sub_tile)
    n = itemsize
    for d in dims:
        n *= d
    return n


def _cnn_kernel(x_ref, w_ref, b_ref, fcw_ref, fcb_ref, out_ref, *, tb, seq_len):
    """TB batch rows: fused conv (all kernel sizes) -> max-pool -> bias -> fc."""
    kd = x_ref.shape[-1]            # kmax * D (im2col'd feature dim)
    cp = w_ref.shape[-1]            # padded 3 * out_channels (lane-dense)
    x = x_ref[...].reshape(tb * seq_len, kd)                          # bf16
    conv = jnp.dot(x, w_ref[...], preferred_element_type=jnp.float32)  # (TB*S, CP) f32
    # adaptive_max_pool1d(output_size=1) == max over the sequence axis.
    pooled = jnp.max(conv.reshape(tb, seq_len, cp), axis=1)           # (TB, CP)
    # Per-channel bias commutes with the max -> add it once, after the pool.
    pooled = pooled + b_ref[...]
    out = jnp.dot(pooled, fcw_ref[...], preferred_element_type=jnp.float32)
    out_ref[...] = (out + fcb_ref[...]).astype(out_ref.dtype)         # (TB, LP)


def cnn_forward(src, params):
    """src: (B, S) int32 token ids -> (B, num_labels) float32 logits."""
    emb = params["embedding"]                      # (V, D)
    x = jnp.take(emb, src, axis=0)                 # (B, S, D)   glue (gather)
    B, S, D = x.shape
    kmax = max(KERNEL_SIZES)
    max_pad = (kmax - 1) // 2
    x_pad = jnp.pad(x, ((0, 0), (max_pad, max_pad), (0, 0)))    # (B, S+2p, D)

    # im2col: x_col[b, s, j*D:(j+1)*D] = x_pad[b, s+j, :]  for j in 0..kmax-1
    x_col = jnp.concatenate([x_pad[:, j:j + S, :] for j in range(kmax)],
                            axis=-1).astype(jnp.bfloat16)       # (B, S, kmax*D)

    C = params["conv_w"][0].shape[-1]
    n_branch = len(KERNEL_SIZES)
    CP = _round_up(n_branch * C, 128)              # lane-dense fused channel dim
    fcw = params["fc_w"]                           # (3C, L)
    num_labels = fcw.shape[-1]
    LP = _round_up(num_labels, 128)                # lane-dense output dim
    KD = kmax * D

    # Fuse the three conv weights into one (kmax*D, CP) matrix (tap-centered);
    # padded channel columns stay zero (and pool/bias to zero -> no effect).
    w_fused = jnp.zeros((kmax, D, CP), jnp.float32)
    b_fused = jnp.zeros((1, CP), jnp.float32)
    col = 0
    for w, b, k in zip(params["conv_w"], params["conv_b"], KERNEL_SIZES):
        off = (kmax - k) // 2                      # center-tap alignment
        w_fused = w_fused.at[off:off + k, :, col:col + C].set(w)
        b_fused = b_fused.at[:, col:col + C].set(b)
        col += C
    w_fused = w_fused.reshape(KD, CP).astype(jnp.bfloat16)

    # FC padded to lane-dense shapes; zero rows/cols for padded channels/labels.
    # Kept in f32: the FC matmul is tiny, and the f32 epilogue helps v5e.
    fcw_p = jnp.zeros((CP, LP), jnp.float32).at[:n_branch * C, :num_labels].set(fcw)
    fcb_p = jnp.zeros((1, LP), jnp.float32).at[:, :num_labels].set(params["fc_b"])

    # ---------------- tile / grid selection ----------------
    vmem_cap = _vmem_capacity_bytes()
    KD_lanes = _round_up(KD, 128)                  # x tile last dim lane-pads
    x_row_bytes = _round_up(S, 16) * KD_lanes * 2  # VMEM bytes per batch row (bf16)
    # (a) double-buffered x tile uses at most ~1/3 of this chip's VMEM.
    x_db_budget = max(4 << 20, vmem_cap // 3)
    tb_vmem = max(8, (x_db_budget // (2 * x_row_bytes)) // 8 * 8)
    # (b) MXU M-fill + per-step-overhead amortization: ~512 matmul rows/step.
    tb_mxu = _round_up(max(1, -(-512 // S)), 8)
    TB = max(8, min(tb_mxu, tb_vmem, _round_up(B, 8)))   # multiple of 8
    Bp = _round_up(B, TB)                                # pad batch in glue
    NB = Bp // TB                                        # grid steps (>=1)

    if Bp != B:
        x_col = jnp.pad(x_col, ((0, Bp - B), (0, 0), (0, 0)))

    # ---------------- VMEM budget (padding-aware) ----------------
    need = (2 * _vmem_bytes((TB, S, KD), jnp.bfloat16)        # x double-buffer
            + 2 * _vmem_bytes(w_fused.shape, jnp.bfloat16)    # conservative:
            + 2 * _vmem_bytes(b_fused.shape, jnp.float32)     # assume 2 buffers
            + 2 * _vmem_bytes(fcw_p.shape, jnp.float32)       # even for weights
            + 2 * _vmem_bytes(fcb_p.shape, jnp.float32)
            + 2 * _vmem_bytes((TB, LP), jnp.float32))
    ceiling = min(100 << 20, int(0.85 * vmem_cap))            # ~100MiB / ~54MiB(v7x)
    vmem_limit = int(max(min(ceiling, need + (8 << 20)), need + (2 << 20)))

    kernel = functools.partial(_cnn_kernel, tb=TB, seq_len=S)

    def run(single_buffer_weights):
        def inv_spec(shape):
            ndim = len(shape)
            imap = lambda i: (0,) * ndim            # grid-invariant operand
            if single_buffer_weights:
                return pl.BlockSpec(shape, imap, pipeline_mode=pl.Buffered(1))
            return pl.BlockSpec(shape, imap)

        return pl.pallas_call(
            kernel,
            out_shape=jax.ShapeDtypeStruct((Bp, LP), jnp.float32),
            grid=(NB,),
            in_specs=[
                pl.BlockSpec((TB, S, KD), lambda i: (i, 0, 0)),   # x tile
                inv_spec(w_fused.shape),                          # fused conv W
                inv_spec(b_fused.shape),                          # fused conv b
                inv_spec(fcw_p.shape),                            # fc weight
                inv_spec(fcb_p.shape),                            # fc bias
            ],
            out_specs=pl.BlockSpec((TB, LP), lambda i: (i, 0)),
            compiler_params=pltpu.CompilerParams(
                dimension_semantics=("parallel",),
                vmem_limit_bytes=vmem_limit),
        )(x_col, w_fused, b_fused, fcw_p, fcb_p)

    try:
        out_pad = run(True)
    except Exception:
        # pl.Buffered(1) / pipeline_mode not supported by this Pallas build:
        # fall back to the default double-buffered weight specs.
        out_pad = run(False)

    return out_pad[:B, :num_labels]


def init_params(key, vocab_size, in_dim, out_channels, num_labels):
    """Deterministic synthetic parameters matching the nn.Module shapes."""
    keys = jax.random.split(key, 2 * len(KERNEL_SIZES) + 3)
    conv_w, conv_b = [], []
    for idx, k in enumerate(KERNEL_SIZES):
        # PyTorch Conv1d weight: (C_out, D_in, k); store as (k, D_in, C_out).
        w = 0.05 * jax.random.normal(keys[2 * idx],
                                     (out_channels, in_dim, k), jnp.float32)
        b = 0.05 * jax.random.normal(keys[2 * idx + 1],
                                     (out_channels,), jnp.float32)
        conv_w.append(jnp.transpose(w, (2, 1, 0)))            # (k, D, C)
        conv_b.append(b.reshape(1, out_channels))             # (1, C)
    embedding = 0.1 * jax.random.normal(keys[-3],
                                        (vocab_size, in_dim), jnp.float32)
    # PyTorch Linear weight: (num_labels, 3C); store transposed (3C, num_labels).
    fc_w = 0.05 * jax.random.normal(
        keys[-2], (num_labels, out_channels * len(KERNEL_SIZES)), jnp.float32)
    fc_b = 0.05 * jax.random.normal(keys[-1], (num_labels,), jnp.float32)
    return {
        "embedding": embedding,
        "conv_w": tuple(conv_w),
        "conv_b": tuple(conv_b),
        "fc_w": jnp.transpose(fc_w),
        "fc_b": fc_b.reshape(1, num_labels),
    }


def reference_forward(src, params):
    """Pure-JAX reference mirroring the PyTorch forward semantics (f32)."""
    x = jnp.take(params["embedding"], src, axis=0)            # (B, S, D)
    xt = jnp.transpose(x, (0, 2, 1))                          # (B, D, S)  NCH
    outs = []
    for w, b, k in zip(params["conv_w"], params["conv_b"], KERNEL_SIZES):
        w_oih = jnp.transpose(w, (2, 1, 0))                   # (C, D, k)
        pad = (k - 1) // 2
        y = lax.conv_general_dilated(
            xt, w_oih, window_strides=(1,), padding=[(pad, pad)],
            dimension_numbers=("NCH", "OIH", "NCH"))
        outs.append(y + b.reshape(1, -1, 1))
    cat = jnp.concatenate(outs, axis=1)                       # (B, 3C, S)
    pooled = jnp.max(cat, axis=-1)                            # (B, 3C)
    return pooled @ params["fc_w"] + params["fc_b"]


if __name__ == "__main__":
    # Small, module-consistent shapes.
    batch, seq_len = 2, 16
    vocab_size, in_dim = 100, 32
    out_channels, num_labels = 64, 8

    key = jax.random.PRNGKey(0)
    k_params, k_src = jax.random.split(key)
    params = init_params(k_params, vocab_size, in_dim, out_channels, num_labels)
    src = jax.random.randint(k_src, (batch, seq_len), 0, vocab_size, jnp.int32)

    out = cnn_forward(src, params)
    jax.block_until_ready(out)

    ref = reference_forward(src, params)
    assert out.shape == (batch, num_labels)
    # bf16 matmul operands with f32 accumulation vs. f32 reference.
    assert jnp.allclose(out, ref, atol=2e-2, rtol=2e-2)

    print("KERNEL_OK")
</pallas_src>

<mosaic_0001>
module attributes {stable_mosaic.version = 11 : i64} {
  func.func @_cnn_kernel(%arg0: i32, %arg1: memref<8x16x160xbf16, #tpu.memory_space<vmem>>, %arg2: memref<160x256xbf16, #tpu.memory_space<vmem>>, %arg3: memref<1x256xf32, #tpu.memory_space<vmem>>, %arg4: memref<256x128xf32, #tpu.memory_space<vmem>>, %arg5: memref<1x128xf32, #tpu.memory_space<vmem>>, %arg6: memref<8x128xf32, #tpu.memory_space<vmem>>) attributes {dimension_semantics = [#tpu.dimension_semantics<parallel>], iteration_bounds = array<i64: 1>, scalar_prefetch = 0 : i64, scratch_operands = 0 : i64, tpu.core_type = #tpu.core_type<tc>, window_params = [{transform_indices = @transform_0, window_bounds = array<i64: 8, 16, 160>}, {pipeline_mode = #tpu.pipeline_mode<synchronous>, transform_indices = @transform_1, window_bounds = array<i64: 160, 256>}, {pipeline_mode = #tpu.pipeline_mode<synchronous>, transform_indices = @transform_2, window_bounds = array<i64: 1, 256>}, {pipeline_mode = #tpu.pipeline_mode<synchronous>, transform_indices = @transform_3, window_bounds = array<i64: 256, 128>}, {pipeline_mode = #tpu.pipeline_mode<synchronous>, transform_indices = @transform_4, window_bounds = array<i64: 1, 128>}, {transform_indices = @transform_5, window_bounds = array<i64: 8, 128>}]} {
    %c0 = arith.constant 0 : index
    %c0_0 = arith.constant 0 : index
    %c0_1 = arith.constant 0 : index
    %0 = vector.load %arg1[%c0, %c0_0, %c0_1] : memref<8x16x160xbf16, #tpu.memory_space<vmem>>, vector<8x16x160xbf16>
    %1 = vector.shape_cast %0 : vector<8x16x160xbf16> to vector<128x160xbf16>
    %c0_2 = arith.constant 0 : index
    %c0_3 = arith.constant 0 : index
    %2 = vector.load %arg2[%c0_2, %c0_3] : memref<160x256xbf16, #tpu.memory_space<vmem>>, vector<160x256xbf16>
    %cst = arith.constant dense<0.000000e+00> : vector<128x256xf32>
    %3 = tpu.matmul %1, %2, %cst {dimension_numbers = #tpu.dot_dimension_numbers<[1], [0], [0], [1], [0, 0, 1, 1], [], []>} : vector<128x160xbf16>, vector<160x256xbf16>, vector<128x256xf32> -> vector<128x256xf32>
    %4 = vector.shape_cast %3 : vector<128x256xf32> to vector<8x16x256xf32>
    %cst_4 = arith.constant dense<0xFF800000> : vector<8x256xf32>
    %5 = vector.multi_reduction <maximumf>, %4, %cst_4 [1] : vector<8x16x256xf32> to vector<8x256xf32>
    %c0_5 = arith.constant 0 : index
    %c0_6 = arith.constant 0 : index
    %6 = vector.load %arg3[%c0_5, %c0_6] : memref<1x256xf32, #tpu.memory_space<vmem>>, vector<1x256xf32>
    %7 = vector.broadcast %6 : vector<1x256xf32> to vector<8x256xf32>
    %8 = arith.addf %5, %7 : vector<8x256xf32>
    %c0_7 = arith.constant 0 : index
    %c0_8 = arith.constant 0 : index
    %9 = vector.load %arg4[%c0_7, %c0_8] : memref<256x128xf32, #tpu.memory_space<vmem>>, vector<256x128xf32>
    %cst_9 = arith.constant dense<0.000000e+00> : vector<8x128xf32>
    %10 = tpu.matmul %8, %9, %cst_9 {dimension_numbers = #tpu.dot_dimension_numbers<[1], [0], [0], [1], [0, 0, 1, 1], [], []>} : vector<8x256xf32>, vector<256x128xf32>, vector<8x128xf32> -> vector<8x128xf32>
    %c0_10 = arith.constant 0 : index
    %c0_11 = arith.constant 0 : index
    %11 = vector.load %arg5[%c0_10, %c0_11] : memref<1x128xf32, #tpu.memory_space<vmem>>, vector<1x128xf32>
    %12 = vector.broadcast %11 : vector<1x128xf32> to vector<8x128xf32>
    %13 = arith.addf %10, %12 : vector<8x128xf32>
    %c0_12 = arith.constant 0 : index
    %c0_13 = arith.constant 0 : index
    %14 = vector.load %arg6[%c0_12, %c0_13] : memref<8x128xf32, #tpu.memory_space<vmem>>, vector<8x128xf32>
    tpu.vector_store %arg6[%c0_12, %c0_13], %13 {strides = array<i32>} : memref<8x128xf32, #tpu.memory_space<vmem>>, vector<8x128xf32>,
    return
  }
  func.func @transform_0(%arg0: i32) -> (i32, i32, i32) {
    %c0_i32 = arith.constant 0 : i32
    %c0_i32_0 = arith.constant 0 : i32
    %c0_i32_1 = arith.constant 0 : i32
    return %arg0, %c0_i32, %c0_i32_0 : i32, i32, i32
  }
  func.func @transform_1(%arg0: i32) -> (i32, i32) {
    %c0_i32 = arith.constant 0 : i32
    %c0_i32_0 = arith.constant 0 : i32
    %c0_i32_1 = arith.constant 0 : i32
    return %c0_i32, %c0_i32_0 : i32, i32
  }
  func.func @transform_2(%arg0: i32) -> (i32, i32) {
    %c0_i32 = arith.constant 0 : i32
    %c0_i32_0 = arith.constant 0 : i32
    %c0_i32_1 = arith.constant 0 : i32
    return %c0_i32, %c0_i32_0 : i32, i32
  }
  func.func @transform_3(%arg0: i32) -> (i32, i32) {
    %c0_i32 = arith.constant 0 : i32
    %c0_i32_0 = arith.constant 0 : i32
    %c0_i32_1 = arith.constant 0 : i32
    return %c0_i32, %c0_i32_0 : i32, i32
  }
  func.func @transform_4(%arg0: i32) -> (i32, i32) {
    %c0_i32 = arith.constant 0 : i32
    %c0_i32_0 = arith.constant 0 : i32
    %c0_i32_1 = arith.constant 0 : i32
    return %c0_i32, %c0_i32_0 : i32, i32
  }
  func.func @transform_5(%arg0: i32) -> (i32, i32) {
    %c0_i32 = arith.constant 0 : i32
    %c0_i32_0 = arith.constant 0 : i32
    return %arg0, %c0_i32 : i32, i32
  }
}

module attributes {stable_mosaic.version = 11 : i64} {
  func.func @_cnn_kernel(%arg0: i32, %arg1: memref<8x16x160xbf16, #tpu.memory_space<vmem>>, %arg2: memref<160x256xbf16, #tpu.memory_space<vmem>>, %arg3: memref<1x256xf32, #tpu.memory_space<vmem>>, %arg4: memref<256x128xf32, #tpu.memory_space<vmem>>, %arg5: memref<1x128xf32, #tpu.memory_space<vmem>>, %arg6: memref<8x128xf32, #tpu.memory_space<vmem>>) attributes {dimension_semantics = [#tpu.dimension_semantics<parallel>], iteration_bounds = array<i64: 1>, scalar_prefetch = 0 : i64, scratch_operands = 0 : i64, tpu.core_type = #tpu.core_type<tc>, window_params = [{transform_indices = @transform_0, window_bounds = array<i64: 8, 16, 160>}, {pipeline_mode = #tpu.pipeline_mode<synchronous>, transform_indices = @transform_1, window_bounds = array<i64: 160, 256>}, {pipeline_mode = #tpu.pipeline_mode<synchronous>, transform_indices = @transform_2, window_bounds = array<i64: 1, 256>}, {pipeline_mode = #tpu.pipeline_mode<synchronous>, transform_indices = @transform_3, window_bounds = array<i64: 256, 128>}, {pipeline_mode = #tpu.pipeline_mode<synchronous>, transform_indices = @transform_4, window_bounds = array<i64: 1, 128>}, {transform_indices = @transform_5, window_bounds = array<i64: 8, 128>}]} {
    %c0 = arith.constant 0 : index
    %c0_0 = arith.constant 0 : index
    %c0_1 = arith.constant 0 : index
    %0 = vector.load %arg1[%c0, %c0_0, %c0_1] : memref<8x16x160xbf16, #tpu.memory_space<vmem>>, vector<8x16x160xbf16>
    %1 = vector.shape_cast %0 : vector<8x16x160xbf16> to vector<128x160xbf16>
    %c0_2 = arith.constant 0 : index
    %c0_3 = arith.constant 0 : index
    %2 = vector.load %arg2[%c0_2, %c0_3] : memref<160x256xbf16, #tpu.memory_space<vmem>>, vector<160x256xbf16>
    %cst = arith.constant dense<0.000000e+00> : vector<128x256xf32>
    %3 = tpu.matmul %1, %2, %cst {dimension_numbers = #tpu.dot_dimension_numbers<[1], [0], [0], [1], [0, 0, 1, 1], [], []>} : vector<128x160xbf16>, vector<160x256xbf16>, vector<128x256xf32> -> vector<128x256xf32>
    %4 = vector.shape_cast %3 : vector<128x256xf32> to vector<8x16x256xf32>
    %cst_4 = arith.constant dense<0xFF800000> : vector<8x256xf32>
    %5 = vector.multi_reduction <maximumf>, %4, %cst_4 [1] : vector<8x16x256xf32> to vector<8x256xf32>
    %c0_5 = arith.constant 0 : index
    %c0_6 = arith.constant 0 : index
    %6 = vector.load %arg3[%c0_5, %c0_6] : memref<1x256xf32, #tpu.memory_space<vmem>>, vector<1x256xf32>
    %7 = vector.broadcast %6 : vector<1x256xf32> to vector<8x256xf32>
    %8 = arith.addf %5, %7 : vector<8x256xf32>
    %c0_7 = arith.constant 0 : index
    %c0_8 = arith.constant 0 : index
    %9 = vector.load %arg4[%c0_7, %c0_8] : memref<256x128xf32, #tpu.memory_space<vmem>>, vector<256x128xf32>
    %cst_9 = arith.constant dense<0.000000e+00> : vector<8x128xf32>
    %10 = tpu.matmul %8, %9, %cst_9 {dimension_numbers = #tpu.dot_dimension_numbers<[1], [0], [0], [1], [0, 0, 1, 1], [], []>} : vector<8x256xf32>, vector<256x128xf32>, vector<8x128xf32> -> vector<8x128xf32>
    %c0_10 = arith.constant 0 : index
    %c0_11 = arith.constant 0 : index
    %11 = vector.load %arg5[%c0_10, %c0_11] : memref<1x128xf32, #tpu.memory_space<vmem>>, vector<1x128xf32>
    %12 = vector.broadcast %11 : vector<1x128xf32> to vector<8x128xf32>
    %13 = arith.addf %10, %12 : vector<8x128xf32>
    %c0_12 = arith.constant 0 : index
    %c0_13 = arith.constant 0 : index
    %14 = vector.load %arg6[%c0_12, %c0_13] : memref<8x128xf32, #tpu.memory_space<vmem>>, vector<8x128xf32>
    tpu.vector_store %arg6[%c0_12, %c0_13], %13 {strides = array<i32>} : memref<8x128xf32, #tpu.memory_space<vmem>>, vector<8x128xf32>,
    return
  }
  func.func @transform_0(%arg0: i32) -> (i32, i32, i32) {
    %c0_i32 = arith.constant 0 : i32
    %c0_i32_0 = arith.constant 0 : i32
    %c0_i32_1 = arith.constant 0 : i32
    return %arg0, %c0_i32, %c0_i32_0 : i32, i32, i32
  }
  func.func @transform_1(%arg0: i32) -> (i32, i32) {
    %c0_i32 = arith.constant 0 : i32
    %c0_i32_0 = arith.constant 0 : i32
    %c0_i32_1 = arith.constant 0 : i32
    return %c0_i32, %c0_i32_0 : i32, i32
  }
  func.func @transform_2(%arg0: i32) -> (i32, i32) {
    %c0_i32 = arith.constant 0 : i32
    %c0_i32_0 = arith.constant 0 : i32
    %c0_i32_1 = arith.constant 0 : i32
    return %c0_i32, %c0_i32_0 : i32, i32
  }
  func.func @transform_3(%arg0: i32) -> (i32, i32) {
    %c0_i32 = arith.constant 0 : i32
    %c0_i32_0 = arith.constant 0 : i32
    %c0_i32_1 = arith.constant 0 : i32
    return %c0_i32, %c0_i32_0 : i32, i32
  }
  func.func @transform_4(%arg0: i32) -> (i32, i32) {
    %c0_i32 = arith.constant 0 : i32
    %c0_i32_0 = arith.constant 0 : i32
    %c0_i32_1 = arith.constant 0 : i32
    return %c0_i32, %c0_i32_0 : i32, i32
  }
  func.func @transform_5(%arg0: i32) -> (i32, i32) {
    %c0_i32 = arith.constant 0 : i32
    %c0_i32_0 = arith.constant 0 : i32
    return %arg0, %c0_i32 : i32, i32
  }
}

</mosaic_0001>

<llo_original>
// kernel: tpu_custom_call.1
$region0: #{tpu_custom_call.1}
  #allocation0 [shape = 'u32[]', space=smem, size = 0x4, offset = 0x4, fixed_abs, tag = 'smem constant byte address 0x4 - core index']
  #allocation1 [shape = 'u32[144,128]{1,0:T(1,128)}', space=vmem, size = 0x12000, scoped, tag = 'internal scratch']
  %s0 = inlined_call_operand.hbm [shape: bf16[8,16,160], index: 0, kind: input, shape index: {}]
  %s1 = inlined_call_operand.hbm [shape: bf16[160,256], index: 1, kind: input, shape index: {}]
  %s2 = inlined_call_operand.vmem [shape: f32[1,256], index: 2, kind: input, shape index: {}]
  %s3 = inlined_call_operand.hbm [shape: f32[256,128], index: 3, kind: input, shape index: {}]
  %s4 = inlined_call_operand.vmem [shape: f32[1,128], index: 4, kind: input, shape index: {}]
  %s5 = inlined_call_operand.hbm [shape: f32[8,128], index: 5, kind: output, shape index: {}]
  %s6 = sld [smem:[#allocation0]]
  $region42: #{tpu_custom_call.1} parent=0
    _
  %s8 = ssub.s32 1, %s6
  %s9 = scalar_select 0, %s8, %s6
  $region1: #{tpu_custom_call.1} parent=0
    #allocation2 [shape = 'u8[65536]{0}', space=vmem, size = 0x10000, scoped, tag = 'input window, operand 0, single buffered']
    #allocation3 [shape = 's32[1]{0}', space=sflag, size = 0x4, scoped, tag = 'scoped memory for tpu_custom_call.1']
    #allocation4 [shape = 's32[1]{0}', space=sflag, size = 0x4, scoped, tag = 'scoped memory for tpu_custom_call.1']
    #allocation5 [shape = 'u8[81920]{0}', space=vmem, size = 0x14000, scoped, tag = 'input window, operand 1, single buffered']
    #allocation6 [shape = 's32[1]{0}', space=sflag, size = 0x4, scoped, tag = 'scoped memory for tpu_custom_call.1']
    #allocation7 [shape = 'u8[131072]{0}', space=vmem, size = 0x20000, scoped, tag = 'input window, operand 3, single buffered']
    #allocation8 [shape = 'u8[4096]{0}', space=vmem, size = 0x1000, scoped, tag = 'output window, operand 0, single buffered']
    %10 = vsyncpa [#allocation3], 0
    %11 = vsyncpa [#allocation6], 0
    %12 = vsyncpa [#allocation4], 0
    // Predicated region
    $region2: #{tpu_custom_call.1} parent=1 // pred_check
      _
    $region3: #{tpu_custom_call.1} parent=1 // pred_check_branch
      %14 = sbr.rel (0) target = $region5
    $region4: #{tpu_custom_call.1} parent=1 // pred_region
      %s16 = ssub.s32 2048, 2048
      %17 = vsyncadd [#allocation3], %s16
      %s18 = sshll.u32 [#allocation2], 4
      %s19 = int_to_ptr.vmem [resolvable:$true] %s18
      %24 = dma.hbm_to_vmem [thread:$0]  %s0, 2048, %s19, [#allocation3], 128, 128, 8
    $region5: #{tpu_custom_call.1} parent=1 // pred_fallthru
      _
    // Predicated region
    $region6: #{tpu_custom_call.1} parent=1 // pred_check
      _
    $region7: #{tpu_custom_call.1} parent=1 // pred_check_branch
      %26 = sbr.rel (0) target = $region9
    $region8: #{tpu_custom_call.1} parent=1 // pred_region
      %s28 = ssub.s32 2560, 2560
      %29 = vsyncadd [#allocation6], %s28
      %s30 = sshll.u32 [#allocation5], 4
      %s31 = int_to_ptr.vmem [resolvable:$true] %s30
      %36 = dma.hbm_to_vmem [thread:$0]  %s1, 2560, %s31, [#allocation6], 128, 128, 8
    $region9: #{tpu_custom_call.1} parent=1 // pred_fallthru
      _
    // Predicated region
    $region10: #{tpu_custom_call.1} parent=1 // pred_check
      _
    $region11: #{tpu_custom_call.1} parent=1 // pred_check_branch
      %38 = sbr.rel (0) target = $region13
    $region12: #{tpu_custom_call.1} parent=1 // pred_region
      _
    $region13: #{tpu_custom_call.1} parent=1 // pred_fallthru
      _
    // Predicated region
    $region14: #{tpu_custom_call.1} parent=1 // pred_check
      _
    $region15: #{tpu_custom_call.1} parent=1 // pred_check_branch
      %40 = sbr.rel (0) target = $region17
    $region16: #{tpu_custom_call.1} parent=1 // pred_region
      %s42 = ssub.s32 4096, 4096
      %43 = vsyncadd [#allocation6], %s42
      %s44 = sshll.u32 [#allocation7], 4
      %s45 = int_to_ptr.vmem [resolvable:$true] %s44
      %50 = dma.hbm_to_vmem [thread:$0]  %s3, 4096, %s45, [#allocation6], 128, 128, 8
    $region17: #{tpu_custom_call.1} parent=1 // pred_fallthru
      _
    // Predicated region
    $region18: #{tpu_custom_call.1} parent=1 // pred_check
      _
    $region19: #{tpu_custom_call.1} parent=1 // pred_check_branch
      %52 = sbr.rel (0) target = $region21
    $region20: #{tpu_custom_call.1} parent=1 // pred_region
      _
    $region21: #{tpu_custom_call.1} parent=1 // pred_fallthru
      _
    // Predicated region
    $region22: #{tpu_custom_call.1} parent=1 // pred_check
      _
    $region23: #{tpu_custom_call.1} parent=1 // pred_check_branch
      %54 = sbr.rel (0) target = $region25
    $region24: #{tpu_custom_call.1} parent=1 // pred_region
      %55 = dma.done [#allocation3], 2048
    $region25: #{tpu_custom_call.1} parent=1 // pred_fallthru
      _
    // Predicated region
    $region26: #{tpu_custom_call.1} parent=1 // pred_check
      _
    $region27: #{tpu_custom_call.1} parent=1 // pred_check_branch
      %57 = sbr.rel (0) target = $region29
    $region28: #{tpu_custom_call.1} parent=1 // pred_region
      %58 = dma.done [#allocation6], 2560
    $region29: #{tpu_custom_call.1} parent=1 // pred_fallthru
      _
    // Predicated region
    $region30: #{tpu_custom_call.1} parent=1 // pred_check
      _
    $region31: #{tpu_custom_call.1} parent=1 // pred_check_branch
      %60 = sbr.rel (0) target = $region33
    $region32: #{tpu_custom_call.1} parent=1 // pred_region
      %61 = dma.done [#allocation6], 4096
    $region33: #{tpu_custom_call.1} parent=1 // pred_fallthru
      _
    %v63 = vld [vmem:[#allocation2] sm:$0xff]
    %v64 = vld [vmem:[#allocation2 + $0x8] sm:$0xff]
    %v65 = vld [vmem:[#allocation2 + $0x10] sm:$0xff]
    %v66 = vld [vmem:[#allocation2 + $0x18] sm:$0xff]
    %v67 = vld [vmem:[#allocation2 + $0x20] sm:$0xff]
    %v68 = vld [vmem:[#allocation2 + $0x28] sm:$0xff]
    %v69 = vld [vmem:[#allocation2 + $0x30] sm:$0xff]
    %v70 = vld [vmem:[#allocation2 + $0x38] sm:$0xff]
    %v71 = vld [vmem:[#allocation2 + $0x40] sm:$0xff]
    %v72 = vld [vmem:[#allocation2 + $0x48] sm:$0xff]
    %v73 = vld [vmem:[#allocation2 + $0x50] sm:$0xff]
    %v74 = vld [vmem:[#allocation2 + $0x58] sm:$0xff]
    %v75 = vld [vmem:[#allocation2 + $0x60] sm:$0xff]
    %v76 = vld [vmem:[#allocation2 + $0x68] sm:$0xff]
    %v77 = vld [vmem:[#allocation2 + $0x70] sm:$0xff]
    %v78 = vld [vmem:[#allocation2 + $0x78] sm:$0xff]
    %v79 = vld [vmem:[#allocation5] sm:$0xff]
    %v80 = vld [vmem:[#allocation5 + $0x8] sm:$0xff]
    %v81 = vld [vmem:[#allocation5 + $0x10] sm:$0xff]
    %v82 = vld [vmem:[#allocation5 + $0x18] sm:$0xff]
    %v83 = vld [vmem:[#allocation5 + $0x20] sm:$0xff]
    %v84 = vld [vmem:[#allocation5 + $0x28] sm:$0xff]
    %v85 = vld [vmem:[#allocation5 + $0x30] sm:$0xff]
    %v86 = vld [vmem:[#allocation5 + $0x38] sm:$0xff]
    %v87 = vld [vmem:[#allocation5 + $0x40] sm:$0xff]
    %v88 = vld [vmem:[#allocation5 + $0x48] sm:$0xff]
    %v89 = vld [vmem:[#allocation5 + $0x50] sm:$0xff]
    %v90 = vld [vmem:[#allocation5 + $0x58] sm:$0xff]
    %v91 = vld [vmem:[#allocation5 + $0x60] sm:$0xff]
    %v92 = vld [vmem:[#allocation5 + $0x68] sm:$0xff]
    %v93 = vld [vmem:[#allocation5 + $0x70] sm:$0xff]
    %v94 = vld [vmem:[#allocation5 + $0x78] sm:$0xff]
    %v95 = vld [vmem:[#allocation5 + $0x80] sm:$0xff]
    %v96 = vld [vmem:[#allocation5 + $0x88] sm:$0xff]
    %v97 = vld [vmem:[#allocation5 + $0x90] sm:$0xff]
    %v98 = vld [vmem:[#allocation5 + $0x98] sm:$0xff]
    %v115 = vunpack.c.l.b16 %v63
    %v116 = vunpack.c.h.b16 %v63
    %v117 = vunpack.c.l.b16 %v64
    %v118 = vunpack.c.h.b16 %v64
    %v119 = vunpack.c.l.b16 %v65
    %v120 = vunpack.c.h.b16 %v65
    %v121 = vunpack.c.l.b16 %v66
    %v122 = vunpack.c.h.b16 %v66
    %v123 = vunpack.c.l.b16 %v67
    %v124 = vunpack.c.h.b16 %v67
    %v125 = vunpack.c.l.b16 %v68
    %v126 = vunpack.c.h.b16 %v68
    %v127 = vunpack.c.l.b16 %v69
    %v128 = vunpack.c.h.b16 %v69
    %v129 = vunpack.c.l.b16 %v70
    %v130 = vunpack.c.h.b16 %v70
    %v131 = vunpack.c.l.b16 %v71
    %v132 = vunpack.c.h.b16 %v71
    %v133 = vunpack.c.l.b16 %v72
    %v134 = vunpack.c.h.b16 %v72
    %v135 = vunpack.c.l.b16 %v73
    %v136 = vunpack.c.h.b16 %v73
    %v137 = vunpack.c.l.b16 %v74
    %v138 = vunpack.c.h.b16 %v74
    %v139 = vunpack.c.l.b16 %v75
    %v140 = vunpack.c.h.b16 %v75
    %v141 = vunpack.c.l.b16 %v76
    %v142 = vunpack.c.h.b16 %v76
    %v143 = vunpack.c.l.b16 %v77
    %v144 = vunpack.c.h.b16 %v77
    %v145 = vunpack.c.l.b16 %v78
    %v146 = vunpack.c.h.b16 %v78
    %v147 = vpack.c.b16 %v117, %v115
    %v148 = vpack.c.b16 %v118, %v116
    %v149 = vpack.c.b16 %v121, %v119
    %v150 = vpack.c.b16 %v122, %v120
    %v151 = vpack.c.b16 %v125, %v123
    %v152 = vpack.c.b16 %v126, %v124
    %v153 = vpack.c.b16 %v129, %v127
    %v154 = vpack.c.b16 %v130, %v128
    %v155 = vpack.c.b16 %v133, %v131
    %v156 = vpack.c.b16 %v134, %v132
    %v157 = vpack.c.b16 %v137, %v135
    %v158 = vpack.c.b16 %v138, %v136
    %v159 = vpack.c.b16 %v141, %v139
    %v160 = vpack.c.b16 %v142, %v140
    %v161 = vpack.c.b16 %v145, %v143
    %v162 = vpack.c.b16 %v146, %v144
    %v191 = vunpack.c.l.b16 %v79
    %v192 = vunpack.c.h.b16 %v79
    %v193 = vunpack.c.l.b16 %v80
    %v194 = vunpack.c.h.b16 %v80
    %v195 = vunpack.c.l.b16 %v81
    %v196 = vunpack.c.h.b16 %v81
    %v197 = vunpack.c.l.b16 %v82
    %v198 = vunpack.c.h.b16 %v82
    %v199 = vunpack.c.l.b16 %v83
    %v200 = vunpack.c.h.b16 %v83
    %v201 = vunpack.c.l.b16 %v84
    %v202 = vunpack.c.h.b16 %v84
    %v203 = vunpack.c.l.b16 %v85
    %v204 = vunpack.c.h.b16 %v85
    %v205 = vunpack.c.l.b16 %v86
    %v206 = vunpack.c.h.b16 %v86
    %v207 = vunpack.c.l.b16 %v87
    %v208 = vunpack.c.h.b16 %v87
    %v209 = vunpack.c.l.b16 %v88
    %v210 = vunpack.c.h.b16 %v88
    %v211 = vunpack.c.l.b16 %v89
    %v212 = vunpack.c.h.b16 %v89
    %v213 = vunpack.c.l.b16 %v90
    %v214 = vunpack.c.h.b16 %v90
    %v215 = vunpack.c.l.b16 %v91
    %v216 = vunpack.c.h.b16 %v91
    %v217 = vunpack.c.l.b16 %v92
    %v218 = vunpack.c.h.b16 %v92
    %v219 = vunpack.c.l.b16 %v93
    %v220 = vunpack.c.h.b16 %v93
    %v221 = vunpack.c.l.b16 %v94
    %v222 = vunpack.c.h.b16 %v94
    %v223 = vunpack.c.l.b16 %v95
    %v224 = vunpack.c.h.b16 %v95
    %v225 = vunpack.c.l.b16 %v96
    %v226 = vunpack.c.h.b16 %v96
    %v227 = vunpack.c.l.b16 %v97
    %v228 = vunpack.c.h.b16 %v97
    %v229 = vunpack.c.l.b16 %v98
    %v230 = vunpack.c.h.b16 %v98
    %v231 = vpack.c.b16 %v193, %v191
    %v232 = vpack.c.b16 %v194, %v192
    %v233 = vpack.c.b16 %v197, %v195
    %v234 = vpack.c.b16 %v198, %v196
    %v235 = vpack.c.b16 %v201, %v199
    %v236 = vpack.c.b16 %v202, %v200
    %v237 = vpack.c.b16 %v205, %v203
    %v238 = vpack.c.b16 %v206, %v204
    %v239 = vpack.c.b16 %v209, %v207
    %v240 = vpack.c.b16 %v210, %v208
    %v241 = vpack.c.b16 %v213, %v211
    %v242 = vpack.c.b16 %v214, %v212
    %v243 = vpack.c.b16 %v217, %v215
    %v244 = vpack.c.b16 %v218, %v216
    %v245 = vpack.c.b16 %v221, %v219
    %v246 = vpack.c.b16 %v222, %v220
    %v247 = vpack.c.b16 %v225, %v223
    %v248 = vpack.c.b16 %v226, %v224
    %v249 = vpack.c.b16 %v229, %v227
    %v250 = vpack.c.b16 %v230, %v228
    %vm271 = vcmask 261120
    %v273 = vsel %vm271, %v148, 0
    %v276 = vsel %vm271, %v150, 0
    %v279 = vsel %vm271, %v152, 0
    %v282 = vsel %vm271, %v154, 0
    %v285 = vsel %vm271, %v156, 0
    %v288 = vsel %vm271, %v158, 0
    %v291 = vsel %vm271, %v160, 0
    %v294 = vsel %vm271, %v162, 0
    %296 = vmatprep.subr.bf16.mxu0 %v232
    %297 = vmatpush1.bf16.msra.mxu0 %v231
    %298 = vmatprep.subr.bf16.mxu0 %v234
    %299 = vmatpush1.bf16.msra.mxu0 %v233
    %300 = vmatprep.subr.bf16.mxu0 %v236
    %301 = vmatpush1.bf16.msra.mxu0 %v235
    %302 = vmatprep.subr.bf16.mxu0 %v238
    %303 = vmatpush1.bf16.msra.mxu0 %v237
    %304 = vmatprep.subr.bf16.mxu0 %v240
    %305 = vmatpush1.bf16.msra.mxu0 %v239
    %306 = vmatprep.subr.bf16.mxu0 %v242
    %307 = vmatpush1.bf16.msra.mxu0 %v241
    %308 = vmatprep.subr.bf16.mxu0 %v244
    %309 = vmatpush1.bf16.msra.mxu0 %v243
    %310 = vmatprep.subr.bf16.mxu0 %v246
    %311 = vmatpush1.bf16.msra.mxu0 %v245
    %312 = vmatprep.subr.bf16.mxu0 %v248
    %313 = vmatpush1.bf16.msra.mxu0 %v247
    %314 = vmatprep.subr.bf16.mxu0 %v250
    %315 = vmatpush1.bf16.msra.mxu0 %v249
    %316 = vmatprep.subr.bf16.mxu0 0
    %317 = vmatpush1.bf16.msra.mxu0 0
    %318 = vmatprep.subr.bf16.mxu0 0
    %319 = vmatpush1.bf16.msra.mxu0 0
    %320 = vmatprep.subr.bf16.mxu0 0
    %321 = vmatpush1.bf16.msra.mxu0 0
    %322 = vmatprep.subr.bf16.mxu0 0
    %323 = vmatpush1.bf16.msra.mxu0 0
    %324 = vmatprep.subr.bf16.mxu0 0
    %325 = vmatpush1.bf16.msra.mxu0 0
    %326 = vmatprep.subr.bf16.mxu0 0
    %327 = vmatpush1.bf16.msra.mxu0 0
    %328 = vmatprep.mubr.bf16.mxu0 %v273
    %329 = vmatmul.mubr.bf16.gmra.mrb[0].mxu0 %v147
    %v330 = vpop.f32.mrb[0].mxu0
    %v331 = vadd.f32 0.0, %v330
    %v332 = vpop.f32.mrb[0].mxu0
    %v333 = vadd.f32 0.0, %v332
    %v334 = vpop.f32.mrb[0].mxu0
    %v335 = vadd.f32 0.0, %v334
    %v336 = vpop.f32.mrb[0].mxu0
    %v337 = vadd.f32 0.0, %v336
    %338 = vmatprep.mubr.bf16.mxu0 %v276
    %339 = vmatmul.mubr.bf16.gmra.mrb[0].mxu0 %v149
    %v340 = vpop.f32.mrb[0].mxu0
    %v341 = vadd.f32 0.0, %v340
    %v342 = vpop.f32.mrb[0].mxu0
    %v343 = vadd.f32 0.0, %v342
    %v344 = vpop.f32.mrb[0].mxu0
    %v345 = vadd.f32 0.0, %v344
    %v346 = vpop.f32.mrb[0].mxu0
    %v347 = vadd.f32 0.0, %v346
    %348 = vmatprep.mubr.bf16.mxu0 %v279
    %349 = vmatmul.mubr.bf16.gmra.mrb[0].mxu0 %v151
    %v350 = vpop.f32.mrb[0].mxu0
    %v351 = vadd.f32 0.0, %v350
    %v352 = vpop.f32.mrb[0].mxu0
    %v353 = vadd.f32 0.0, %v352
    %v354 = vpop.f32.mrb[0].mxu0
    %v355 = vadd.f32 0.0, %v354
    %v356 = vpop.f32.mrb[0].mxu0
    %v357 = vadd.f32 0.0, %v356
    %358 = vmatprep.mubr.bf16.mxu0 %v282
    %359 = vmatmul.mubr.bf16.gmra.mrb[0].mxu0 %v153
    %v360 = vpop.f32.mrb[0].mxu0
    %v361 = vadd.f32 0.0, %v360
    %v362 = vpop.f32.mrb[0].mxu0
    %v363 = vadd.f32 0.0, %v362
    %v364 = vpop.f32.mrb[0].mxu0
    %v365 = vadd.f32 0.0, %v364
    %v366 = vpop.f32.mrb[0].mxu0
    %v367 = vadd.f32 0.0, %v366
    %368 = vmatprep.mubr.bf16.mxu0 %v285
    %369 = vmatmul.mubr.bf16.gmra.mrb[0].mxu0 %v155
    %v370 = vpop.f32.mrb[0].mxu0
    %v371 = vadd.f32 0.0, %v370
    %v372 = vpop.f32.mrb[0].mxu0
    %v373 = vadd.f32 0.0, %v372
    %v374 = vpop.f32.mrb[0].mxu0
    %v375 = vadd.f32 0.0, %v374
    %v376 = vpop.f32.mrb[0].mxu0
    %v377 = vadd.f32 0.0, %v376
    %378 = vmatprep.mubr.bf16.mxu0 %v288
    %379 = vmatmul.mubr.bf16.gmra.mrb[0].mxu0 %v157
    %v380 = vpop.f32.mrb[0].mxu0
    %v381 = vadd.f32 0.0, %v380
    %v382 = vpop.f32.mrb[0].mxu0
    %v383 = vadd.f32 0.0, %v382
    %v384 = vpop.f32.mrb[0].mxu0
    %v385 = vadd.f32 0.0, %v384
    %v386 = vpop.f32.mrb[0].mxu0
    %v387 = vadd.f32 0.0, %v386
    %388 = vmatprep.mubr.bf16.mxu0 %v291
    %389 = vmatmul.mubr.bf16.gmra.mrb[0].mxu0 %v159
    %v390 = vpop.f32.mrb[0].mxu0
    %v391 = vadd.f32 0.0, %v390
    %v392 = vpop.f32.mrb[0].mxu0
    %v393 = vadd.f32 0.0, %v392
    %v394 = vpop.f32.mrb[0].mxu0
    %v395 = vadd.f32 0.0, %v394
    %v396 = vpop.f32.mrb[0].mxu0
    %v397 = vadd.f32 0.0, %v396
    %398 = vmatprep.mubr.bf16.mxu0 %v294
    %399 = vmatmul.mubr.bf16.gmra.mrb[0].mxu0 %v161
    %v400 = vpop.f32.mrb[0].mxu0
    %v401 = vadd.f32 0.0, %v400
    %v402 = vpop.f32.mrb[0].mxu0
    %v403 = vadd.f32 0.0, %v402
    %v404 = vpop.f32.mrb[0].mxu0
    %v405 = vadd.f32 0.0, %v404
    %v406 = vpop.f32.mrb[0].mxu0
    %v407 = vadd.f32 0.0, %v406
    %408 = vdwg.mxu0
    %v409 = vmax.f32 %v331, %v335
    %v410 = vrot.slane %v409, 4
    %v411 = vmax.f32 %v409, %v410
    %v412 = vrot.slane %v411, 2
    %v413 = vmax.f32 %v411, %v412
    %v414 = vrot.slane %v413, 1
    %v415 = vmax.f32 %v413, %v414
    %v416 = vmax.f32 %v333, %v337
    %v417 = vrot.slane %v416, 4
    %v418 = vmax.f32 %v416, %v417
    %v419 = vrot.slane %v418, 2
    %v420 = vmax.f32 %v418, %v419
    %v421 = vrot.slane %v420, 1
    %v422 = vmax.f32 %v420, %v421
    %v423 = vmax.f32 %v341, %v345
    %v424 = vrot.slane %v423, 4
    %v425 = vmax.f32 %v423, %v424
    %v426 = vrot.slane %v425, 2
    %v427 = vmax.f32 %v425, %v426
    %v428 = vrot.slane %v427, 1
    %v429 = vmax.f32 %v427, %v428
    %v430 = vmax.f32 %v343, %v347
    %v431 = vrot.slane %v430, 4
    %v432 = vmax.f32 %v430, %v431
    %v433 = vrot.slane %v432, 2
    %v434 = vmax.f32 %v432, %v433
    %v435 = vrot.slane %v434, 1
    %v436 = vmax.f32 %v434, %v435
    %v437 = vmax.f32 %v351, %v355
    %v438 = vrot.slane %v437, 4
    %v439 = vmax.f32 %v437, %v438
    %v440 = vrot.slane %v439, 2
    %v441 = vmax.f32 %v439, %v440
    %v442 = vrot.slane %v441, 1
    %v443 = vmax.f32 %v441, %v442
    %v444 = vmax.f32 %v353, %v357
    %v445 = vrot.slane %v444, 4
    %v446 = vmax.f32 %v444, %v445
    %v447 = vrot.slane %v446, 2
    %v448 = vmax.f32 %v446, %v447
    %v449 = vrot.slane %v448, 1
    %v450 = vmax.f32 %v448, %v449
    %v451 = vmax.f32 %v361, %v365
    %v452 = vrot.slane %v451, 4
    %v453 = vmax.f32 %v451, %v452
    %v454 = vrot.slane %v453, 2
    %v455 = vmax.f32 %v453, %v454
    %v456 = vrot.slane %v455, 1
    %v457 = vmax.f32 %v455, %v456
    %v458 = vmax.f32 %v363, %v367
    %v459 = vrot.slane %v458, 4
    %v460 = vmax.f32 %v458, %v459
    %v461 = vrot.slane %v460, 2
    %v462 = vmax.f32 %v460, %v461
    %v463 = vrot.slane %v462, 1
    %v464 = vmax.f32 %v462, %v463
    %v465 = vmax.f32 %v371, %v375
    %v466 = vrot.slane %v465, 4
    %v467 = vmax.f32 %v465, %v466
    %v468 = vrot.slane %v467, 2
    %v469 = vmax.f32 %v467, %v468
    %v470 = vrot.slane %v469, 1
    %v471 = vmax.f32 %v469, %v470
    %v472 = vmax.f32 %v373, %v377
    %v473 = vrot.slane %v472, 4
    %v474 = vmax.f32 %v472, %v473
    %v475 = vrot.slane %v474, 2
    %v476 = vmax.f32 %v474, %v475
    %v477 = vrot.slane %v476, 1
    %v478 = vmax.f32 %v476, %v477
    %v479 = vmax.f32 %v381, %v385
    %v480 = vrot.slane %v479, 4
    %v481 = vmax.f32 %v479, %v480
    %v482 = vrot.slane %v481, 2
    %v483 = vmax.f32 %v481, %v482
    %v484 = vrot.slane %v483, 1
    %v485 = vmax.f32 %v483, %v484
    %v486 = vmax.f32 %v383, %v387
    %v487 = vrot.slane %v486, 4
    %v488 = vmax.f32 %v486, %v487
    %v489 = vrot.slane %v488, 2
    %v490 = vmax.f32 %v488, %v489
    %v491 = vrot.slane %v490, 1
    %v492 = vmax.f32 %v490, %v491
    %v493 = vmax.f32 %v391, %v395
    %v494 = vrot.slane %v493, 4
    %v495 = vmax.f32 %v493, %v494
    %v496 = vrot.slane %v495, 2
    %v497 = vmax.f32 %v495, %v496
    %v498 = vrot.slane %v497, 1
    %v499 = vmax.f32 %v497, %v498
    %v500 = vmax.f32 %v393, %v397
    %v501 = vrot.slane %v500, 4
    %v502 = vmax.f32 %v500, %v501
    %v503 = vrot.slane %v502, 2
    %v504 = vmax.f32 %v502, %v503
    %v505 = vrot.slane %v504, 1
    %v506 = vmax.f32 %v504, %v505
    %v507 = vmax.f32 %v401, %v405
    %v508 = vrot.slane %v507, 4
    %v509 = vmax.f32 %v507, %v508
    %v510 = vrot.slane %v509, 2
    %v511 = vmax.f32 %v509, %v510
    %v512 = vrot.slane %v511, 1
    %v513 = vmax.f32 %v511, %v512
    %v514 = vmax.f32 %v403, %v407
    %v515 = vrot.slane %v514, 4
    %v516 = vmax.f32 %v514, %v515
    %v517 = vrot.slane %v516, 2
    %v518 = vmax.f32 %v516, %v517
    %v519 = vrot.slane %v518, 1
    %v520 = vmax.f32 %v518, %v519
    %v521 = vld [vmem:[%s2] sm:$0x3]
    %v523 = vlaneseq
    %v524 = vshrl.u32 %v523, 7
    %v525 = vsub.s32 0, %v524
    %v526 = vrot.slane %v521, %v525
    %v527 = vlaneseq
    %v528 = vshrl.u32 %v527, 7
    %v529 = vsub.s32 1, %v528
    %v530 = vrot.slane %v521, %v529
    %v533 = vadd.f32 %v415, %v526
    %v534 = vadd.f32 %v422, %v530
    %v535 = vadd.f32 %v429, %v526
    %v536 = vadd.f32 %v436, %v530
    %v537 = vadd.f32 %v443, %v526
    %v538 = vadd.f32 %v450, %v530
    %v539 = vadd.f32 %v457, %v526
    %v540 = vadd.f32 %v464, %v530
    %v541 = vadd.f32 %v471, %v526
    %v542 = vadd.f32 %v478, %v530
    %v543 = vadd.f32 %v485, %v526
    %v544 = vadd.f32 %v492, %v530
    %v545 = vadd.f32 %v499, %v526
    %v546 = vadd.f32 %v506, %v530
    %v547 = vadd.f32 %v513, %v526
    %v548 = vadd.f32 %v520, %v530
    %v549 = vld [vmem:[#allocation7] sm:$0xff]
    %v550 = vld [vmem:[#allocation7 + $0x8] sm:$0xff]
    %v551 = vld [vmem:[#allocation7 + $0x10] sm:$0xff]
    %v552 = vld [vmem:[#allocation7 + $0x18] sm:$0xff]
    %v553 = vld [vmem:[#allocation7 + $0x20] sm:$0xff]
    %v554 = vld [vmem:[#allocation7 + $0x28] sm:$0xff]
    %v555 = vld [vmem:[#allocation7 + $0x30] sm:$0xff]
    %v556 = vld [vmem:[#allocation7 + $0x38] sm:$0xff]
    %v557 = vld [vmem:[#allocation7 + $0x40] sm:$0xff]
    %v558 = vld [vmem:[#allocation7 + $0x48] sm:$0xff]
    %v559 = vld [vmem:[#allocation7 + $0x50] sm:$0xff]
    %v560 = vld [vmem:[#allocation7 + $0x58] sm:$0xff]
    %v561 = vld [vmem:[#allocation7 + $0x60] sm:$0xff]
    %v562 = vld [vmem:[#allocation7 + $0x68] sm:$0xff]
    %v563 = vld [vmem:[#allocation7 + $0x70] sm:$0xff]
    %v564 = vld [vmem:[#allocation7 + $0x78] sm:$0xff]
    %v565 = vld [vmem:[#allocation7 + $0x80] sm:$0xff]
    %v566 = vld [vmem:[#allocation7 + $0x88] sm:$0xff]
    %v567 = vld [vmem:[#allocation7 + $0x90] sm:$0xff]
    %v568 = vld [vmem:[#allocation7 + $0x98] sm:$0xff]
    %v569 = vld [vmem:[#allocation7 + $0xa0] sm:$0xff]
    %v570 = vld [vmem:[#allocation7 + $0xa8] sm:$0xff]
    %v571 = vld [vmem:[#allocation7 + $0xb0] sm:$0xff]
    %v572 = vld [vmem:[#allocation7 + $0xb8] sm:$0xff]
    %v573 = vld [vmem:[#allocation7 + $0xc0] sm:$0xff]
    %v574 = vld [vmem:[#allocation7 + $0xc8] sm:$0xff]
    %v575 = vld [vmem:[#allocation7 + $0xd0] sm:$0xff]
    %v576 = vld [vmem:[#allocation7 + $0xd8] sm:$0xff]
    %v577 = vld [vmem:[#allocation7 + $0xe0] sm:$0xff]
    %v578 = vld [vmem:[#allocation7 + $0xe8] sm:$0xff]
    %v579 = vld [vmem:[#allocation7 + $0xf0] sm:$0xff]
    %v580 = vld [vmem:[#allocation7 + $0xf8] sm:$0xff]
    %v581 = vld [vmem:[%s4] sm:$0x1]
    %v583 = vlaneseq
    %v584 = vshrl.u32 %v583, 7
    %v585 = vsub.s32 0, %v584
    %v586 = vrot.slane %v581, %v585
    %v604 = vrot.slane %v535, 7
    %vm605 = vcmask 1041409
    %v606 = vsel %vm605, %v604, %v533
    %v607 = vrot.slane %v537, 6
    %vm608 = vcmask 1042434
    %v609 = vsel %vm608, %v607, %v606
    %v610 = vrot.slane %v539, 5
    %vm611 = vcmask 1043459
    %v612 = vsel %vm611, %v610, %v609
    %v613 = vrot.slane %v541, 4
    %vm614 = vcmask 1044484
    %v615 = vsel %vm614, %v613, %v612
    %v616 = vrot.slane %v543, 3
    %vm617 = vcmask 1045509
    %v618 = vsel %vm617, %v616, %v615
    %v619 = vrot.slane %v545, 2
    %vm620 = vcmask 1046534
    %v621 = vsel %vm620, %v619, %v618
    %v622 = vrot.slane %v547, 1
    %vm623 = vcmask 1047559
    %v624 = vsel %vm623, %v622, %v621
    %v625 = vrot.slane %v536, 7
    %v626 = vsel %vm605, %v625, %v534
    %v627 = vrot.slane %v538, 6
    %v628 = vsel %vm608, %v627, %v626
    %v629 = vrot.slane %v540, 5
    %v630 = vsel %vm611, %v629, %v628
    %v631 = vrot.slane %v542, 4
    %v632 = vsel %vm614, %v631, %v630
    %v633 = vrot.slane %v544, 3
    %v634 = vsel %vm617, %v633, %v632
    %v635 = vrot.slane %v546, 2
    %v636 = vsel %vm620, %v635, %v634
    %v637 = vrot.slane %v548, 1
    %v638 = vsel %vm623, %v637, %v636
    %641 = vmatprep.subr.mxu0 0.0
    %642 = vmatpush1.msra.mxu0 %v549
    %643 = vmatprep.subr.mxu0 0.0
    %644 = vmatpush1.msra.mxu0 %v550
    %645 = vmatprep.subr.mxu0 0.0
    %646 = vmatpush1.msra.mxu0 %v551
    %647 = vmatprep.subr.mxu0 0.0
    %648 = vmatpush1.msra.mxu0 %v552
    %649 = vmatprep.subr.mxu0 0.0
    %650 = vmatpush1.msra.mxu0 %v553
    %651 = vmatprep.subr.mxu0 0.0
    %652 = vmatpush1.msra.mxu0 %v554
    %653 = vmatprep.subr.mxu0 0.0
    %654 = vmatpush1.msra.mxu0 %v555
    %655 = vmatprep.subr.mxu0 0.0
    %656 = vmatpush1.msra.mxu0 %v556
    %657 = vmatprep.subr.mxu0 0.0
    %658 = vmatpush1.msra.mxu0 %v557
    %659 = vmatprep.subr.mxu0 0.0
    %660 = vmatpush1.msra.mxu0 %v558
    %661 = vmatprep.subr.mxu0 0.0
    %662 = vmatpush1.msra.mxu0 %v559
    %663 = vmatprep.subr.mxu0 0.0
    %664 = vmatpush1.msra.mxu0 %v560
    %665 = vmatprep.subr.mxu0 0.0
    %666 = vmatpush1.msra.mxu0 %v561
    %667 = vmatprep.subr.mxu0 0.0
    %668 = vmatpush1.msra.mxu0 %v562
    %669 = vmatprep.subr.mxu0 0.0
    %670 = vmatpush1.msra.mxu0 %v563
    %671 = vmatprep.subr.mxu0 0.0
    %672 = vmatpush1.msra.mxu0 %v564
    %673 = vmatprep.subr.mxu0 0.0
    %674 = vmatpush1.msra.mxu0 %v565
    %675 = vmatprep.subr.mxu0 0.0
    %676 = vmatpush1.msra.mxu0 %v566
    %677 = vmatprep.subr.mxu0 0.0
    %678 = vmatpush1.msra.mxu0 %v567
    %679 = vmatprep.subr.mxu0 0.0
    %680 = vmatpush1.msra.mxu0 %v568
    %681 = vmatprep.subr.mxu0 0.0
    %682 = vmatpush1.msra.mxu0 %v569
    %683 = vmatprep.subr.mxu0 0.0
    %684 = vmatpush1.msra.mxu0 %v570
    %685 = vmatprep.subr.mxu0 0.0
    %686 = vmatpush1.msra.mxu0 %v571
    %687 = vmatprep.subr.mxu0 0.0
    %688 = vmatpush1.msra.mxu0 %v572
    %689 = vmatprep.subr.mxu0 0.0
    %690 = vmatpush1.msra.mxu0 %v573
    %691 = vmatprep.subr.mxu0 0.0
    %692 = vmatpush1.msra.mxu0 %v574
    %693 = vmatprep.subr.mxu0 0.0
    %694 = vmatpush1.msra.mxu0 %v575
    %695 = vmatprep.subr.mxu0 0.0
    %696 = vmatpush1.msra.mxu0 %v576
    %697 = vmatprep.subr.mxu0 0.0
    %698 = vmatpush1.msra.mxu0 %v577
    %699 = vmatprep.subr.mxu0 0.0
    %700 = vmatpush1.msra.mxu0 %v578
    %701 = vmatprep.subr.mxu0 0.0
    %702 = vmatpush1.msra.mxu0 %v579
    %703 = vmatprep.subr.mxu0 0.0
    %704 = vmatpush1.msra.mxu0 %v580
    %705 = vmatprep.mubr.f32.mxu0 %v638
    %706 = vmatmul.mubr.f32.gmra.mrb[0].mxu0 %v624
    %v707 = vpop.f32.mrb[0].mxu0
    %v708 = vadd.f32 %v586, %v707
    %v709 = vpop.f32.mrb[0].mxu0
    %710 = vdwg.mxu0
    %711 = vst [vmem:[#allocation8] sm:$0xff] %v708
    // Predicated region
    $region34: #{tpu_custom_call.1} parent=1 // pred_check
      _
    $region35: #{tpu_custom_call.1} parent=1 // pred_check_branch
      %713 = sbr.rel (0) target = $region37
    $region36: #{tpu_custom_call.1} parent=1 // pred_region
      %s715 = ssub.s32 128, 128
      %716 = vsyncadd [#allocation4], %s715
      %s718 = sshll.u32 [#allocation8], 4
      %s719 = int_to_ptr.vmem [resolvable:$true] %s718
      %721 = dma.vmem_to_hbm [thread:$0]  %s719, 128, %s5, [#allocation4]
    $region37: #{tpu_custom_call.1} parent=1 // pred_fallthru
      _
    // Predicated region
    $region38: #{tpu_custom_call.1} parent=1 // pred_check
      _
    $region39: #{tpu_custom_call.1} parent=1 // pred_check_branch
      %723 = sbr.rel (0) target = $region41
    $region40: #{tpu_custom_call.1} parent=1 // pred_region
      %724 = dma.done [#allocation4], 128
    $region41: #{tpu_custom_call.1} parent=1 // pred_fallthru
      _
    %725 = vsyncpa [#allocation3], 1
    %726 = vsyncpa [#allocation6], 1
    %727 = vsyncpa [#allocation4], 1

// kernel: tpu_custom_call.1
$region0: #{tpu_custom_call.1}
  #allocation0 [shape = 'u32[]', space=smem, size = 0x4, offset = 0x4, fixed_abs, tag = 'smem constant byte address 0x4 - core index']
  #allocation1 [shape = 'u32[144,128]{1,0:T(1,128)}', space=vmem, size = 0x12000, scoped, tag = 'internal scratch']
  %s0 = inlined_call_operand.hbm [shape: bf16[8,16,160], index: 0, kind: input, shape index: {}]
  %s1 = inlined_call_operand.hbm [shape: bf16[160,256], index: 1, kind: input, shape index: {}]
  %s2 = inlined_call_operand.vmem [shape: f32[1,256], index: 2, kind: input, shape index: {}]
  %s3 = inlined_call_operand.hbm [shape: f32[256,128], index: 3, kind: input, shape index: {}]
  %s4 = inlined_call_operand.vmem [shape: f32[1,128], index: 4, kind: input, shape index: {}]
  %s5 = inlined_call_operand.hbm [shape: f32[8,128], index: 5, kind: output, shape index: {}]
  %s6 = sld [smem:[#allocation0]]
  $region42: #{tpu_custom_call.1} parent=0
    _
  %s8 = ssub.s32 1, %s6
  %s9 = scalar_select 0, %s8, %s6
  $region1: #{tpu_custom_call.1} parent=0
    #allocation2 [shape = 'u8[65536]{0}', space=vmem, size = 0x10000, scoped, tag = 'input window, operand 0, single buffered']
    #allocation3 [shape = 's32[1]{0}', space=sflag, size = 0x4, scoped, tag = 'scoped memory for tpu_custom_call.1']
    #allocation4 [shape = 's32[1]{0}', space=sflag, size = 0x4, scoped, tag = 'scoped memory for tpu_custom_call.1']
    #allocation5 [shape = 'u8[81920]{0}', space=vmem, size = 0x14000, scoped, tag = 'input window, operand 1, single buffered']
    #allocation6 [shape = 's32[1]{0}', space=sflag, size = 0x4, scoped, tag = 'scoped memory for tpu_custom_call.1']
    #allocation7 [shape = 'u8[131072]{0}', space=vmem, size = 0x20000, scoped, tag = 'input window, operand 3, single buffered']
    #allocation8 [shape = 'u8[4096]{0}', space=vmem, size = 0x1000, scoped, tag = 'output window, operand 0, single buffered']
    %10 = vsyncpa [#allocation3], 0
    %11 = vsyncpa [#allocation6], 0
    %12 = vsyncpa [#allocation4], 0
    // Predicated region
    $region2: #{tpu_custom_call.1} parent=1 // pred_check
      _
    $region3: #{tpu_custom_call.1} parent=1 // pred_check_branch
      %14 = sbr.rel (0) target = $region5
    $region4: #{tpu_custom_call.1} parent=1 // pred_region
      %s16 = ssub.s32 2048, 2048
      %17 = vsyncadd [#allocation3], %s16
      %s18 = sshll.u32 [#allocation2], 4
      %s19 = int_to_ptr.vmem [resolvable:$true] %s18
      %24 = dma.hbm_to_vmem [thread:$0]  %s0, 2048, %s19, [#allocation3], 128, 128, 8
    $region5: #{tpu_custom_call.1} parent=1 // pred_fallthru
      _
    // Predicated region
    $region6: #{tpu_custom_call.1} parent=1 // pred_check
      _
    $region7: #{tpu_custom_call.1} parent=1 // pred_check_branch
      %26 = sbr.rel (0) target = $region9
    $region8: #{tpu_custom_call.1} parent=1 // pred_region
      %s28 = ssub.s32 2560, 2560
      %29 = vsyncadd [#allocation6], %s28
      %s30 = sshll.u32 [#allocation5], 4
      %s31 = int_to_ptr.vmem [resolvable:$true] %s30
      %36 = dma.hbm_to_vmem [thread:$0]  %s1, 2560, %s31, [#allocation6], 128, 128, 8
    $region9: #{tpu_custom_call.1} parent=1 // pred_fallthru
      _
    // Predicated region
    $region10: #{tpu_custom_call.1} parent=1 // pred_check
      _
    $region11: #{tpu_custom_call.1} parent=1 // pred_check_branch
      %38 = sbr.rel (0) target = $region13
    $region12: #{tpu_custom_call.1} parent=1 // pred_region
      _
    $region13: #{tpu_custom_call.1} parent=1 // pred_fallthru
      _
    // Predicated region
    $region14: #{tpu_custom_call.1} parent=1 // pred_check
      _
    $region15: #{tpu_custom_call.1} parent=1 // pred_check_branch
      %40 = sbr.rel (0) target = $region17
    $region16: #{tpu_custom_call.1} parent=1 // pred_region
      %s42 = ssub.s32 4096, 4096
      %43 = vsyncadd [#allocation6], %s42
      %s44 = sshll.u32 [#allocation7], 4
      %s45 = int_to_ptr.vmem [resolvable:$true] %s44
      %50 = dma.hbm_to_vmem [thread:$0]  %s3, 4096, %s45, [#allocation6], 128, 128, 8
    $region17: #{tpu_custom_call.1} parent=1 // pred_fallthru
      _
    // Predicated region
    $region18: #{tpu_custom_call.1} parent=1 // pred_check
      _
    $region19: #{tpu_custom_call.1} parent=1 // pred_check_branch
      %52 = sbr.rel (0) target = $region21
    $region20: #{tpu_custom_call.1} parent=1 // pred_region
      _
    $region21: #{tpu_custom_call.1} parent=1 // pred_fallthru
      _
    // Predicated region
    $region22: #{tpu_custom_call.1} parent=1 // pred_check
      _
    $region23: #{tpu_custom_call.1} parent=1 // pred_check_branch
      %54 = sbr.rel (0) target = $region25
    $region24: #{tpu_custom_call.1} parent=1 // pred_region
      %55 = dma.done [#allocation3], 2048
    $region25: #{tpu_custom_call.1} parent=1 // pred_fallthru
      _
    // Predicated region
    $region26: #{tpu_custom_call.1} parent=1 // pred_check
      _
    $region27: #{tpu_custom_call.1} parent=1 // pred_check_branch
      %57 = sbr.rel (0) target = $region29
    $region28: #{tpu_custom_call.1} parent=1 // pred_region
      %58 = dma.done [#allocation6], 2560
    $region29: #{tpu_custom_call.1} parent=1 // pred_fallthru
      _
    // Predicated region
    $region30: #{tpu_custom_call.1} parent=1 // pred_check
      _
    $region31: #{tpu_custom_call.1} parent=1 // pred_check_branch
      %60 = sbr.rel (0) target = $region33
    $region32: #{tpu_custom_call.1} parent=1 // pred_region
      %61 = dma.done [#allocation6], 4096
    $region33: #{tpu_custom_call.1} parent=1 // pred_fallthru
      _
    %v63 = vld [vmem:[#allocation2] sm:$0xff]
    %v64 = vld [vmem:[#allocation2 + $0x8] sm:$0xff]
    %v65 = vld [vmem:[#allocation2 + $0x10] sm:$0xff]
    %v66 = vld [vmem:[#allocation2 + $0x18] sm:$0xff]
    %v67 = vld [vmem:[#allocation2 + $0x20] sm:$0xff]
    %v68 = vld [vmem:[#allocation2 + $0x28] sm:$0xff]
    %v69 = vld [vmem:[#allocation2 + $0x30] sm:$0xff]
    %v70 = vld [vmem:[#allocation2 + $0x38] sm:$0xff]
    %v71 = vld [vmem:[#allocation2 + $0x40] sm:$0xff]
    %v72 = vld [vmem:[#allocation2 + $0x48] sm:$0xff]
    %v73 = vld [vmem:[#allocation2 + $0x50] sm:$0xff]
    %v74 = vld [vmem:[#allocation2 + $0x58] sm:$0xff]
    %v75 = vld [vmem:[#allocation2 + $0x60] sm:$0xff]
    %v76 = vld [vmem:[#allocation2 + $0x68] sm:$0xff]
    %v77 = vld [vmem:[#allocation2 + $0x70] sm:$0xff]
    %v78 = vld [vmem:[#allocation2 + $0x78] sm:$0xff]
    %v79 = vld [vmem:[#allocation5] sm:$0xff]
    %v80 = vld [vmem:[#allocation5 + $0x8] sm:$0xff]
    %v81 = vld [vmem:[#allocation5 + $0x10] sm:$0xff]
    %v82 = vld [vmem:[#allocation5 + $0x18] sm:$0xff]
    %v83 = vld [vmem:[#allocation5 + $0x20] sm:$0xff]
    %v84 = vld [vmem:[#allocation5 + $0x28] sm:$0xff]
    %v85 = vld [vmem:[#allocation5 + $0x30] sm:$0xff]
    %v86 = vld [vmem:[#allocation5 + $0x38] sm:$0xff]
    %v87 = vld [vmem:[#allocation5 + $0x40] sm:$0xff]
    %v88 = vld [vmem:[#allocation5 + $0x48] sm:$0xff]
    %v89 = vld [vmem:[#allocation5 + $0x50] sm:$0xff]
    %v90 = vld [vmem:[#allocation5 + $0x58] sm:$0xff]
    %v91 = vld [vmem:[#allocation5 + $0x60] sm:$0xff]
    %v92 = vld [vmem:[#allocation5 + $0x68] sm:$0xff]
    %v93 = vld [vmem:[#allocation5 + $0x70] sm:$0xff]
    %v94 = vld [vmem:[#allocation5 + $0x78] sm:$0xff]
    %v95 = vld [vmem:[#allocation5 + $0x80] sm:$0xff]
    %v96 = vld [vmem:[#allocation5 + $0x88] sm:$0xff]
    %v97 = vld [vmem:[#allocation5 + $0x90] sm:$0xff]
    %v98 = vld [vmem:[#allocation5 + $0x98] sm:$0xff]
    %v115 = vunpack.c.l.b16 %v63
    %v116 = vunpack.c.h.b16 %v63
    %v117 = vunpack.c.l.b16 %v64
    %v118 = vunpack.c.h.b16 %v64
    %v119 = vunpack.c.l.b16 %v65
    %v120 = vunpack.c.h.b16 %v65
    %v121 = vunpack.c.l.b16 %v66
    %v122 = vunpack.c.h.b16 %v66
    %v123 = vunpack.c.l.b16 %v67
    %v124 = vunpack.c.h.b16 %v67
    %v125 = vunpack.c.l.b16 %v68
    %v126 = vunpack.c.h.b16 %v68
    %v127 = vunpack.c.l.b16 %v69
    %v128 = vunpack.c.h.b16 %v69
    %v129 = vunpack.c.l.b16 %v70
    %v130 = vunpack.c.h.b16 %v70
    %v131 = vunpack.c.l.b16 %v71
    %v132 = vunpack.c.h.b16 %v71
    %v133 = vunpack.c.l.b16 %v72
    %v134 = vunpack.c.h.b16 %v72
    %v135 = vunpack.c.l.b16 %v73
    %v136 = vunpack.c.h.b16 %v73
    %v137 = vunpack.c.l.b16 %v74
    %v138 = vunpack.c.h.b16 %v74
    %v139 = vunpack.c.l.b16 %v75
    %v140 = vunpack.c.h.b16 %v75
    %v141 = vunpack.c.l.b16 %v76
    %v142 = vunpack.c.h.b16 %v76
    %v143 = vunpack.c.l.b16 %v77
    %v144 = vunpack.c.h.b16 %v77
    %v145 = vunpack.c.l.b16 %v78
    %v146 = vunpack.c.h.b16 %v78
    %v147 = vpack.c.b16 %v117, %v115
    %v148 = vpack.c.b16 %v118, %v116
    %v149 = vpack.c.b16 %v121, %v119
    %v150 = vpack.c.b16 %v122, %v120
    %v151 = vpack.c.b16 %v125, %v123
    %v152 = vpack.c.b16 %v126, %v124
    %v153 = vpack.c.b16 %v129, %v127
    %v154 = vpack.c.b16 %v130, %v128
    %v155 = vpack.c.b16 %v133, %v131
    %v156 = vpack.c.b16 %v134, %v132
    %v157 = vpack.c.b16 %v137, %v135
    %v158 = vpack.c.b16 %v138, %v136
    %v159 = vpack.c.b16 %v141, %v139
    %v160 = vpack.c.b16 %v142, %v140
    %v161 = vpack.c.b16 %v145, %v143
    %v162 = vpack.c.b16 %v146, %v144
    %v191 = vunpack.c.l.b16 %v79
    %v192 = vunpack.c.h.b16 %v79
    %v193 = vunpack.c.l.b16 %v80
    %v194 = vunpack.c.h.b16 %v80
    %v195 = vunpack.c.l.b16 %v81
    %v196 = vunpack.c.h.b16 %v81
    %v197 = vunpack.c.l.b16 %v82
    %v198 = vunpack.c.h.b16 %v82
    %v199 = vunpack.c.l.b16 %v83
    %v200 = vunpack.c.h.b16 %v83
    %v201 = vunpack.c.l.b16 %v84
    %v202 = vunpack.c.h.b16 %v84
    %v203 = vunpack.c.l.b16 %v85
    %v204 = vunpack.c.h.b16 %v85
    %v205 = vunpack.c.l.b16 %v86
    %v206 = vunpack.c.h.b16 %v86
    %v207 = vunpack.c.l.b16 %v87
    %v208 = vunpack.c.h.b16 %v87
    %v209 = vunpack.c.l.b16 %v88
    %v210 = vunpack.c.h.b16 %v88
    %v211 = vunpack.c.l.b16 %v89
    %v212 = vunpack.c.h.b16 %v89
    %v213 = vunpack.c.l.b16 %v90
    %v214 = vunpack.c.h.b16 %v90
    %v215 = vunpack.c.l.b16 %v91
    %v216 = vunpack.c.h.b16 %v91
    %v217 = vunpack.c.l.b16 %v92
    %v218 = vunpack.c.h.b16 %v92
    %v219 = vunpack.c.l.b16 %v93
    %v220 = vunpack.c.h.b16 %v93
    %v221 = vunpack.c.l.b16 %v94
    %v222 = vunpack.c.h.b16 %v94
    %v223 = vunpack.c.l.b16 %v95
    %v224 = vunpack.c.h.b16 %v95
    %v225 = vunpack.c.l.b16 %v96
    %v226 = vunpack.c.h.b16 %v96
    %v227 = vunpack.c.l.b16 %v97
    %v228 = vunpack.c.h.b16 %v97
    %v229 = vunpack.c.l.b16 %v98
    %v230 = vunpack.c.h.b16 %v98
    %v231 = vpack.c.b16 %v193, %v191
    %v232 = vpack.c.b16 %v194, %v192
    %v233 = vpack.c.b16 %v197, %v195
    %v234 = vpack.c.b16 %v198, %v196
    %v235 = vpack.c.b16 %v201, %v199
    %v236 = vpack.c.b16 %v202, %v200
    %v237 = vpack.c.b16 %v205, %v203
    %v238 = vpack.c.b16 %v206, %v204
    %v239 = vpack.c.b16 %v209, %v207
    %v240 = vpack.c.b16 %v210, %v208
    %v241 = vpack.c.b16 %v213, %v211
    %v242 = vpack.c.b16 %v214, %v212
    %v243 = vpack.c.b16 %v217, %v215
    %v244 = vpack.c.b16 %v218, %v216
    %v245 = vpack.c.b16 %v221, %v219
    %v246 = vpack.c.b16 %v222, %v220
    %v247 = vpack.c.b16 %v225, %v223
    %v248 = vpack.c.b16 %v226, %v224
    %v249 = vpack.c.b16 %v229, %v227
    %v250 = vpack.c.b16 %v230, %v228
    %vm271 = vcmask 261120
    %v273 = vsel %vm271, %v148, 0
    %v276 = vsel %vm271, %v150, 0
    %v279 = vsel %vm271, %v152, 0
    %v282 = vsel %vm271, %v154, 0
    %v285 = vsel %vm271, %v156, 0
    %v288 = vsel %vm271, %v158, 0
    %v291 = vsel %vm271, %v160, 0
    %v294 = vsel %vm271, %v162, 0
    %296 = vmatprep.subr.bf16.mxu0 %v232
    %297 = vmatpush1.bf16.msra.mxu0 %v231
    %298 = vmatprep.subr.bf16.mxu0 %v234
    %299 = vmatpush1.bf16.msra.mxu0 %v233
    %300 = vmatprep.subr.bf16.mxu0 %v236
    %301 = vmatpush1.bf16.msra.mxu0 %v235
    %302 = vmatprep.subr.bf16.mxu0 %v238
    %303 = vmatpush1.bf16.msra.mxu0 %v237
    %304 = vmatprep.subr.bf16.mxu0 %v240
    %305 = vmatpush1.bf16.msra.mxu0 %v239
    %306 = vmatprep.subr.bf16.mxu0 %v242
    %307 = vmatpush1.bf16.msra.mxu0 %v241
    %308 = vmatprep.subr.bf16.mxu0 %v244
    %309 = vmatpush1.bf16.msra.mxu0 %v243
    %310 = vmatprep.subr.bf16.mxu0 %v246
    %311 = vmatpush1.bf16.msra.mxu0 %v245
    %312 = vmatprep.subr.bf16.mxu0 %v248
    %313 = vmatpush1.bf16.msra.mxu0 %v247
    %314 = vmatprep.subr.bf16.mxu0 %v250
    %315 = vmatpush1.bf16.msra.mxu0 %v249
    %316 = vmatprep.subr.bf16.mxu0 0
    %317 = vmatpush1.bf16.msra.mxu0 0
    %318 = vmatprep.subr.bf16.mxu0 0
    %319 = vmatpush1.bf16.msra.mxu0 0
    %320 = vmatprep.subr.bf16.mxu0 0
    %321 = vmatpush1.bf16.msra.mxu0 0
    %322 = vmatprep.subr.bf16.mxu0 0
    %323 = vmatpush1.bf16.msra.mxu0 0
    %324 = vmatprep.subr.bf16.mxu0 0
    %325 = vmatpush1.bf16.msra.mxu0 0
    %326 = vmatprep.subr.bf16.mxu0 0
    %327 = vmatpush1.bf16.msra.mxu0 0
    %328 = vmatprep.mubr.bf16.mxu0 %v273
    %329 = vmatmul.mubr.bf16.gmra.mrb[0].mxu0 %v147
    %v330 = vpop.f32.mrb[0].mxu0
    %v331 = vadd.f32 0.0, %v330
    %v332 = vpop.f32.mrb[0].mxu0
    %v333 = vadd.f32 0.0, %v332
    %v334 = vpop.f32.mrb[0].mxu0
    %v335 = vadd.f32 0.0, %v334
    %v336 = vpop.f32.mrb[0].mxu0
    %v337 = vadd.f32 0.0, %v336
    %338 = vmatprep.mubr.bf16.mxu0 %v276
    %339 = vmatmul.mubr.bf16.gmra.mrb[0].mxu0 %v149
    %v340 = vpop.f32.mrb[0].mxu0
    %v341 = vadd.f32 0.0, %v340
    %v342 = vpop.f32.mrb[0].mxu0
    %v343 = vadd.f32 0.0, %v342
    %v344 = vpop.f32.mrb[0].mxu0
    %v345 = vadd.f32 0.0, %v344
    %v346 = vpop.f32.mrb[0].mxu0
    %v347 = vadd.f32 0.0, %v346
    %348 = vmatprep.mubr.bf16.mxu0 %v279
    %349 = vmatmul.mubr.bf16.gmra.mrb[0].mxu0 %v151
    %v350 = vpop.f32.mrb[0].mxu0
    %v351 = vadd.f32 0.0, %v350
    %v352 = vpop.f32.mrb[0].mxu0
    %v353 = vadd.f32 0.0, %v352
    %v354 = vpop.f32.mrb[0].mxu0
    %v355 = vadd.f32 0.0, %v354
    %v356 = vpop.f32.mrb[0].mxu0
    %v357 = vadd.f32 0.0, %v356
    %358 = vmatprep.mubr.bf16.mxu0 %v282
    %359 = vmatmul.mubr.bf16.gmra.mrb[0].mxu0 %v153
    %v360 = vpop.f32.mrb[0].mxu0
    %v361 = vadd.f32 0.0, %v360
    %v362 = vpop.f32.mrb[0].mxu0
    %v363 = vadd.f32 0.0, %v362
    %v364 = vpop.f32.mrb[0].mxu0
    %v365 = vadd.f32 0.0, %v364
    %v366 = vpop.f32.mrb[0].mxu0
    %v367 = vadd.f32 0.0, %v366
    %368 = vmatprep.mubr.bf16.mxu0 %v285
    %369 = vmatmul.mubr.bf16.gmra.mrb[0].mxu0 %v155
    %v370 = vpop.f32.mrb[0].mxu0
    %v371 = vadd.f32 0.0, %v370
    %v372 = vpop.f32.mrb[0].mxu0
    %v373 = vadd.f32 0.0, %v372
    %v374 = vpop.f32.mrb[0].mxu0
    %v375 = vadd.f32 0.0, %v374
    %v376 = vpop.f32.mrb[0].mxu0
    %v377 = vadd.f32 0.0, %v376
    %378 = vmatprep.mubr.bf16.mxu0 %v288
    %379 = vmatmul.mubr.bf16.gmra.mrb[0].mxu0 %v157
    %v380 = vpop.f32.mrb[0].mxu0
    %v381 = vadd.f32 0.0, %v380
    %v382 = vpop.f32.mrb[0].mxu0
    %v383 = vadd.f32 0.0, %v382
    %v384 = vpop.f32.mrb[0].mxu0
    %v385 = vadd.f32 0.0, %v384
    %v386 = vpop.f32.mrb[0].mxu0
    %v387 = vadd.f32 0.0, %v386
    %388 = vmatprep.mubr.bf16.mxu0 %v291
    %389 = vmatmul.mubr.bf16.gmra.mrb[0].mxu0 %v159
    %v390 = vpop.f32.mrb[0].mxu0
    %v391 = vadd.f32 0.0, %v390
    %v392 = vpop.f32.mrb[0].mxu0
    %v393 = vadd.f32 0.0, %v392
    %v394 = vpop.f32.mrb[0].mxu0
    %v395 = vadd.f32 0.0, %v394
    %v396 = vpop.f32.mrb[0].mxu0
    %v397 = vadd.f32 0.0, %v396
    %398 = vmatprep.mubr.bf16.mxu0 %v294
    %399 = vmatmul.mubr.bf16.gmra.mrb[0].mxu0 %v161
    %v400 = vpop.f32.mrb[0].mxu0
    %v401 = vadd.f32 0.0, %v400
    %v402 = vpop.f32.mrb[0].mxu0
    %v403 = vadd.f32 0.0, %v402
    %v404 = vpop.f32.mrb[0].mxu0
    %v405 = vadd.f32 0.0, %v404
    %v406 = vpop.f32.mrb[0].mxu0
    %v407 = vadd.f32 0.0, %v406
    %408 = vdwg.mxu0
    %v409 = vmax.f32 %v331, %v335
    %v410 = vrot.slane %v409, 4
    %v411 = vmax.f32 %v409, %v410
    %v412 = vrot.slane %v411, 2
    %v413 = vmax.f32 %v411, %v412
    %v414 = vrot.slane %v413, 1
    %v415 = vmax.f32 %v413, %v414
    %v416 = vmax.f32 %v333, %v337
    %v417 = vrot.slane %v416, 4
    %v418 = vmax.f32 %v416, %v417
    %v419 = vrot.slane %v418, 2
    %v420 = vmax.f32 %v418, %v419
    %v421 = vrot.slane %v420, 1
    %v422 = vmax.f32 %v420, %v421
    %v423 = vmax.f32 %v341, %v345
    %v424 = vrot.slane %v423, 4
    %v425 = vmax.f32 %v423, %v424
    %v426 = vrot.slane %v425, 2
    %v427 = vmax.f32 %v425, %v426
    %v428 = vrot.slane %v427, 1
    %v429 = vmax.f32 %v427, %v428
    %v430 = vmax.f32 %v343, %v347
    %v431 = vrot.slane %v430, 4
    %v432 = vmax.f32 %v430, %v431
    %v433 = vrot.slane %v432, 2
    %v434 = vmax.f32 %v432, %v433
    %v435 = vrot.slane %v434, 1
    %v436 = vmax.f32 %v434, %v435
    %v437 = vmax.f32 %v351, %v355
    %v438 = vrot.slane %v437, 4
    %v439 = vmax.f32 %v437, %v438
    %v440 = vrot.slane %v439, 2
    %v441 = vmax.f32 %v439, %v440
    %v442 = vrot.slane %v441, 1
    %v443 = vmax.f32 %v441, %v442
    %v444 = vmax.f32 %v353, %v357
    %v445 = vrot.slane %v444, 4
    %v446 = vmax.f32 %v444, %v445
    %v447 = vrot.slane %v446, 2
    %v448 = vmax.f32 %v446, %v447
    %v449 = vrot.slane %v448, 1
    %v450 = vmax.f32 %v448, %v449
    %v451 = vmax.f32 %v361, %v365
    %v452 = vrot.slane %v451, 4
    %v453 = vmax.f32 %v451, %v452
    %v454 = vrot.slane %v453, 2
    %v455 = vmax.f32 %v453, %v454
    %v456 = vrot.slane %v455, 1
    %v457 = vmax.f32 %v455, %v456
    %v458 = vmax.f32 %v363, %v367
    %v459 = vrot.slane %v458, 4
    %v460 = vmax.f32 %v458, %v459
    %v461 = vrot.slane %v460, 2
    %v462 = vmax.f32 %v460, %v461
    %v463 = vrot.slane %v462, 1
    %v464 = vmax.f32 %v462, %v463
    %v465 = vmax.f32 %v371, %v375
    %v466 = vrot.slane %v465, 4
    %v467 = vmax.f32 %v465, %v466
    %v468 = vrot.slane %v467, 2
    %v469 = vmax.f32 %v467, %v468
    %v470 = vrot.slane %v469, 1
    %v471 = vmax.f32 %v469, %v470
    %v472 = vmax.f32 %v373, %v377
    %v473 = vrot.slane %v472, 4
    %v474 = vmax.f32 %v472, %v473
    %v475 = vrot.slane %v474, 2
    %v476 = vmax.f32 %v474, %v475
    %v477 = vrot.slane %v476, 1
    %v478 = vmax.f32 %v476, %v477
    %v479 = vmax.f32 %v381, %v385
    %v480 = vrot.slane %v479, 4
    %v481 = vmax.f32 %v479, %v480
    %v482 = vrot.slane %v481, 2
    %v483 = vmax.f32 %v481, %v482
    %v484 = vrot.slane %v483, 1
    %v485 = vmax.f32 %v483, %v484
    %v486 = vmax.f32 %v383, %v387
    %v487 = vrot.slane %v486, 4
    %v488 = vmax.f32 %v486, %v487
    %v489 = vrot.slane %v488, 2
    %v490 = vmax.f32 %v488, %v489
    %v491 = vrot.slane %v490, 1
    %v492 = vmax.f32 %v490, %v491
    %v493 = vmax.f32 %v391, %v395
    %v494 = vrot.slane %v493, 4
    %v495 = vmax.f32 %v493, %v494
    %v496 = vrot.slane %v495, 2
    %v497 = vmax.f32 %v495, %v496
    %v498 = vrot.slane %v497, 1
    %v499 = vmax.f32 %v497, %v498
    %v500 = vmax.f32 %v393, %v397
    %v501 = vrot.slane %v500, 4
    %v502 = vmax.f32 %v500, %v501
    %v503 = vrot.slane %v502, 2
    %v504 = vmax.f32 %v502, %v503
    %v505 = vrot.slane %v504, 1
    %v506 = vmax.f32 %v504, %v505
    %v507 = vmax.f32 %v401, %v405
    %v508 = vrot.slane %v507, 4
    %v509 = vmax.f32 %v507, %v508
    %v510 = vrot.slane %v509, 2
    %v511 = vmax.f32 %v509, %v510
    %v512 = vrot.slane %v511, 1
    %v513 = vmax.f32 %v511, %v512
    %v514 = vmax.f32 %v403, %v407
    %v515 = vrot.slane %v514, 4
    %v516 = vmax.f32 %v514, %v515
    %v517 = vrot.slane %v516, 2
    %v518 = vmax.f32 %v516, %v517
    %v519 = vrot.slane %v518, 1
    %v520 = vmax.f32 %v518, %v519
    %v521 = vld [vmem:[%s2] sm:$0x3]
    %v523 = vlaneseq
    %v524 = vshrl.u32 %v523, 7
    %v525 = vsub.s32 0, %v524
    %v526 = vrot.slane %v521, %v525
    %v527 = vlaneseq
    %v528 = vshrl.u32 %v527, 7
    %v529 = vsub.s32 1, %v528
    %v530 = vrot.slane %v521, %v529
    %v533 = vadd.f32 %v415, %v526
    %v534 = vadd.f32 %v422, %v530
    %v535 = vadd.f32 %v429, %v526
    %v536 = vadd.f32 %v436, %v530
    %v537 = vadd.f32 %v443, %v526
    %v538 = vadd.f32 %v450, %v530
    %v539 = vadd.f32 %v457, %v526
    %v540 = vadd.f32 %v464, %v530
    %v541 = vadd.f32 %v471, %v526
    %v542 = vadd.f32 %v478, %v530
    %v543 = vadd.f32 %v485, %v526
    %v544 = vadd.f32 %v492, %v530
    %v545 = vadd.f32 %v499, %v526
    %v546 = vadd.f32 %v506, %v530
    %v547 = vadd.f32 %v513, %v526
    %v548 = vadd.f32 %v520, %v530
    %v549 = vld [vmem:[#allocation7] sm:$0xff]
    %v550 = vld [vmem:[#allocation7 + $0x8] sm:$0xff]
    %v551 = vld [vmem:[#allocation7 + $0x10] sm:$0xff]
    %v552 = vld [vmem:[#allocation7 + $0x18] sm:$0xff]
    %v553 = vld [vmem:[#allocation7 + $0x20] sm:$0xff]
    %v554 = vld [vmem:[#allocation7 + $0x28] sm:$0xff]
    %v555 = vld [vmem:[#allocation7 + $0x30] sm:$0xff]
    %v556 = vld [vmem:[#allocation7 + $0x38] sm:$0xff]
    %v557 = vld [vmem:[#allocation7 + $0x40] sm:$0xff]
    %v558 = vld [vmem:[#allocation7 + $0x48] sm:$0xff]
    %v559 = vld [vmem:[#allocation7 + $0x50] sm:$0xff]
    %v560 = vld [vmem:[#allocation7 + $0x58] sm:$0xff]
    %v561 = vld [vmem:[#allocation7 + $0x60] sm:$0xff]
    %v562 = vld [vmem:[#allocation7 + $0x68] sm:$0xff]
    %v563 = vld [vmem:[#allocation7 + $0x70] sm:$0xff]
    %v564 = vld [vmem:[#allocation7 + $0x78] sm:$0xff]
    %v565 = vld [vmem:[#allocation7 + $0x80] sm:$0xff]
    %v566 = vld [vmem:[#allocation7 + $0x88] sm:$0xff]
    %v567 = vld [vmem:[#allocation7 + $0x90] sm:$0xff]
    %v568 = vld [vmem:[#allocation7 + $0x98] sm:$0xff]
    %v569 = vld [vmem:[#allocation7 + $0xa0] sm:$0xff]
    %v570 = vld [vmem:[#allocation7 + $0xa8] sm:$0xff]
    %v571 = vld [vmem:[#allocation7 + $0xb0] sm:$0xff]
    %v572 = vld [vmem:[#allocation7 + $0xb8] sm:$0xff]
    %v573 = vld [vmem:[#allocation7 + $0xc0] sm:$0xff]
    %v574 = vld [vmem:[#allocation7 + $0xc8] sm:$0xff]
    %v575 = vld [vmem:[#allocation7 + $0xd0] sm:$0xff]
    %v576 = vld [vmem:[#allocation7 + $0xd8] sm:$0xff]
    %v577 = vld [vmem:[#allocation7 + $0xe0] sm:$0xff]
    %v578 = vld [vmem:[#allocation7 + $0xe8] sm:$0xff]
    %v579 = vld [vmem:[#allocation7 + $0xf0] sm:$0xff]
    %v580 = vld [vmem:[#allocation7 + $0xf8] sm:$0xff]
    %v581 = vld [vmem:[%s4] sm:$0x1]
    %v583 = vlaneseq
    %v584 = vshrl.u32 %v583, 7
    %v585 = vsub.s32 0, %v584
    %v586 = vrot.slane %v581, %v585
    %v604 = vrot.slane %v535, 7
    %vm605 = vcmask 1041409
    %v606 = vsel %vm605, %v604, %v533
    %v607 = vrot.slane %v537, 6
    %vm608 = vcmask 1042434
    %v609 = vsel %vm608, %v607, %v606
    %v610 = vrot.slane %v539, 5
    %vm611 = vcmask 1043459
    %v612 = vsel %vm611, %v610, %v609
    %v613 = vrot.slane %v541, 4
    %vm614 = vcmask 1044484
    %v615 = vsel %vm614, %v613, %v612
    %v616 = vrot.slane %v543, 3
    %vm617 = vcmask 1045509
    %v618 = vsel %vm617, %v616, %v615
    %v619 = vrot.slane %v545, 2
    %vm620 = vcmask 1046534
    %v621 = vsel %vm620, %v619, %v618
    %v622 = vrot.slane %v547, 1
    %vm623 = vcmask 1047559
    %v624 = vsel %vm623, %v622, %v621
    %v625 = vrot.slane %v536, 7
    %v626 = vsel %vm605, %v625, %v534
    %v627 = vrot.slane %v538, 6
    %v628 = vsel %vm608, %v627, %v626
    %v629 = vrot.slane %v540, 5
    %v630 = vsel %vm611, %v629, %v628
    %v631 = vrot.slane %v542, 4
    %v632 = vsel %vm614, %v631, %v630
    %v633 = vrot.slane %v544, 3
    %v634 = vsel %vm617, %v633, %v632
    %v635 = vrot.slane %v546, 2
    %v636 = vsel %vm620, %v635, %v634
    %v637 = vrot.slane %v548, 1
    %v638 = vsel %vm623, %v637, %v636
    %641 = vmatprep.subr.mxu0 0.0
    %642 = vmatpush1.msra.mxu0 %v549
    %643 = vmatprep.subr.mxu0 0.0
    %644 = vmatpush1.msra.mxu0 %v550
    %645 = vmatprep.subr.mxu0 0.0
    %646 = vmatpush1.msra.mxu0 %v551
    %647 = vmatprep.subr.mxu0 0.0
    %648 = vmatpush1.msra.mxu0 %v552
    %649 = vmatprep.subr.mxu0 0.0
    %650 = vmatpush1.msra.mxu0 %v553
    %651 = vmatprep.subr.mxu0 0.0
    %652 = vmatpush1.msra.mxu0 %v554
    %653 = vmatprep.subr.mxu0 0.0
    %654 = vmatpush1.msra.mxu0 %v555
    %655 = vmatprep.subr.mxu0 0.0
    %656 = vmatpush1.msra.mxu0 %v556
    %657 = vmatprep.subr.mxu0 0.0
    %658 = vmatpush1.msra.mxu0 %v557
    %659 = vmatprep.subr.mxu0 0.0
    %660 = vmatpush1.msra.mxu0 %v558
    %661 = vmatprep.subr.mxu0 0.0
    %662 = vmatpush1.msra.mxu0 %v559
    %663 = vmatprep.subr.mxu0 0.0
    %664 = vmatpush1.msra.mxu0 %v560
    %665 = vmatprep.subr.mxu0 0.0
    %666 = vmatpush1.msra.mxu0 %v561
    %667 = vmatprep.subr.mxu0 0.0
    %668 = vmatpush1.msra.mxu0 %v562
    %669 = vmatprep.subr.mxu0 0.0
    %670 = vmatpush1.msra.mxu0 %v563
    %671 = vmatprep.subr.mxu0 0.0
    %672 = vmatpush1.msra.mxu0 %v564
    %673 = vmatprep.subr.mxu0 0.0
    %674 = vmatpush1.msra.mxu0 %v565
    %675 = vmatprep.subr.mxu0 0.0
    %676 = vmatpush1.msra.mxu0 %v566
    %677 = vmatprep.subr.mxu0 0.0
    %678 = vmatpush1.msra.mxu0 %v567
    %679 = vmatprep.subr.mxu0 0.0
    %680 = vmatpush1.msra.mxu0 %v568
    %681 = vmatprep.subr.mxu0 0.0
    %682 = vmatpush1.msra.mxu0 %v569
    %683 = vmatprep.subr.mxu0 0.0
    %684 = vmatpush1.msra.mxu0 %v570
    %685 = vmatprep.subr.mxu0 0.0
    %686 = vmatpush1.msra.mxu0 %v571
    %687 = vmatprep.subr.mxu0 0.0
    %688 = vmatpush1.msra.mxu0 %v572
    %689 = vmatprep.subr.mxu0 0.0
    %690 = vmatpush1.msra.mxu0 %v573
    %691 = vmatprep.subr.mxu0 0.0
    %692 = vmatpush1.msra.mxu0 %v574
    %693 = vmatprep.subr.mxu0 0.0
    %694 = vmatpush1.msra.mxu0 %v575
    %695 = vmatprep.subr.mxu0 0.0
    %696 = vmatpush1.msra.mxu0 %v576
    %697 = vmatprep.subr.mxu0 0.0
    %698 = vmatpush1.msra.mxu0 %v577
    %699 = vmatprep.subr.mxu0 0.0
    %700 = vmatpush1.msra.mxu0 %v578
    %701 = vmatprep.subr.mxu0 0.0
    %702 = vmatpush1.msra.mxu0 %v579
    %703 = vmatprep.subr.mxu0 0.0
    %704 = vmatpush1.msra.mxu0 %v580
    %705 = vmatprep.mubr.f32.mxu0 %v638
    %706 = vmatmul.mubr.f32.gmra.mrb[0].mxu0 %v624
    %v707 = vpop.f32.mrb[0].mxu0
    %v708 = vadd.f32 %v586, %v707
    %v709 = vpop.f32.mrb[0].mxu0
    %710 = vdwg.mxu0
    %711 = vst [vmem:[#allocation8] sm:$0xff] %v708
    // Predicated region
    $region34: #{tpu_custom_call.1} parent=1 // pred_check
      _
    $region35: #{tpu_custom_call.1} parent=1 // pred_check_branch
      %713 = sbr.rel (0) target = $region37
    $region36: #{tpu_custom_call.1} parent=1 // pred_region
      %s715 = ssub.s32 128, 128
      %716 = vsyncadd [#allocation4], %s715
      %s718 = sshll.u32 [#allocation8], 4
      %s719 = int_to_ptr.vmem [resolvable:$true] %s718
      %721 = dma.vmem_to_hbm [thread:$0]  %s719, 128, %s5, [#allocation4]
    $region37: #{tpu_custom_call.1} parent=1 // pred_fallthru
      _
    // Predicated region
    $region38: #{tpu_custom_call.1} parent=1 // pred_check
      _
    $region39: #{tpu_custom_call.1} parent=1 // pred_check_branch
      %723 = sbr.rel (0) target = $region41
    $region40: #{tpu_custom_call.1} parent=1 // pred_region
      %724 = dma.done [#allocation4], 128
    $region41: #{tpu_custom_call.1} parent=1 // pred_fallthru
      _
    %725 = vsyncpa [#allocation3], 1
    %726 = vsyncpa [#allocation6], 1
    %727 = vsyncpa [#allocation4], 1

</llo_original>
